<compile_context>
chip_gen: v7x
topology: tpu7x:2x2x1
jax: 0.10.0
libtpu: 0.0.40
codegen_flags: <defaults>
</compile_context>

<pallas_src>
import functools

import jax
import jax.numpy as jnp
from jax import lax
from jax.experimental import pallas as pl
from jax.experimental.pallas import tpu as pltpu

KSIZE = 7
PAD = KSIZE // 2


def spatial_attention_kernel(w_ref, cmask_ref, rmask_ref, x_ref, o_ref, *, W):
    # w_ref    : SMEM f32[2*7*7]      flattened conv weight, idx = c*49 + di*7 + dj
    # cmask_ref: VMEM f32[7, HW]      column-validity mask per column offset dj
    # rmask_ref: VMEM f32[7, HW]      row-validity mask per row offset di
    # x_ref    : VMEM    [BP, C, HW]  BP batch images, lane-dense flattened spatial
    # o_ref    : VMEM    [BP, C, HW]
    BP, C, HW = x_ref.shape
    CK = min(8, C)               # channels per reduce/apply chunk (full sublanes)
    nck = C // CK
    rem = C - nck * CK

    # ---- fused channel mean + max, chunked by CK sublanes ------------------
    first = x_ref[:, pl.ds(0, CK), :].astype(jnp.float32)          # (BP, CK, HW)
    if nck > 1:
        def body(i, carry):
            s, m = carry
            c0 = pl.multiple_of(i * CK, CK)
            blk = x_ref[:, pl.ds(c0, CK), :].astype(jnp.float32)
            return s + blk, jnp.maximum(m, blk)
        s, m = lax.fori_loop(1, nck, body, (first, first),
                             unroll=min(4, nck - 1))
    else:
        s, m = first, first
    ssum = jnp.sum(s, axis=1)                                       # (BP, HW) XLU
    mmax = jnp.max(m, axis=1)                                       # (BP, HW) XLU
    if rem:
        tail = x_ref[:, pl.ds(nck * CK, rem), :].astype(jnp.float32)
        ssum = ssum + jnp.sum(tail, axis=1)
        mmax = jnp.maximum(mmax, jnp.max(tail, axis=1))
    avg = ssum * (1.0 / C)

    # ---- 7x7 zero-padded cross-correlation via lane rolls ------------------
    # Column (lane) shifts per (channel, dj): roll, mask, then immediately FMA
    # into the 7 per-row-offset accumulators (conv is linear, so the row shift
    # and row mask can be applied after summing channel & column taps).
    acc_di = [None] * KSIZE
    for c, m_c in enumerate((avg, mmax)):
        for dj in range(KSIZE):
            dw = dj - PAD
            if dw == 0:
                shifted = m_c
            else:
                shifted = (pltpu.roll(m_c, shift=(-dw) % HW, axis=1)
                           * cmask_ref[pl.ds(dj, 1), :])
            base = c * KSIZE * KSIZE + dj
            for di in range(KSIZE):
                term = w_ref[base + di * KSIZE] * shifted
                acc_di[di] = term if acc_di[di] is None else acc_di[di] + term

    acc = None
    for di in range(KSIZE):
        dh = di - PAD
        inner = acc_di[di]
        if dh != 0:
            inner = (pltpu.roll(inner, shift=(-dh * W) % HW, axis=1)
                     * rmask_ref[pl.ds(di, 1), :])
        acc = inner if acc is None else acc + inner

    scale = jax.nn.sigmoid(acc)                                     # (BP, HW) f32
    scale_b = jnp.expand_dims(scale.astype(x_ref.dtype), 1)         # (BP, 1, HW)

    # ---- apply: lane-dense, unmasked full-width stores ----------------------
    for c0 in range(0, C, CK):
        ck = min(CK, C - c0)
        blk = x_ref[:, pl.ds(c0, ck), :]
        o_ref[:, pl.ds(c0, ck), :] = (blk * scale_b).astype(o_ref.dtype)


def spatial_attention(x, conv_weight):
    """x: [B, C, H, W]; conv_weight: f32[1, 2, 7, 7] -> [B, C, H, W]."""
    B, C, H, W = x.shape
    HW = H * W
    HW_pad = ((HW + 127) // 128) * 128            # lane-dense last dim
    BP = min(8, B)                                # images packed per grid step
    B_pad = ((B + BP - 1) // BP) * BP

    x_flat = x.reshape(B, C, HW)
    if HW_pad != HW:
        x_flat = jnp.pad(x_flat, ((0, 0), (0, 0), (0, HW_pad - HW)))
    if B_pad != B:
        x_flat = jnp.pad(x_flat, ((0, B_pad - B), (0, 0), (0, 0)))

    w_flat = conv_weight.reshape(-1).astype(jnp.float32)            # [98] -> SMEM

    # Precomputed boundary-validity masks (constant index_map -> VMEM resident).
    flat = jnp.arange(HW_pad, dtype=jnp.int32)
    col = flat % W
    row = flat // W
    offs = (jnp.arange(KSIZE, dtype=jnp.int32) - PAD)[:, None]      # (7, 1)
    col_mask = ((col[None, :] + offs >= 0)
                & (col[None, :] + offs < W)).astype(jnp.float32)    # (7, HW_pad)
    row_mask = ((row[None, :] + offs >= 0)
                & (row[None, :] + offs < H)).astype(jnp.float32)    # (7, HW_pad)

    kernel = functools.partial(spatial_attention_kernel, W=W)

    # Per-generation VMEM budget (75% of physical; never request all of v7x's 64 MiB).
    try:
        vmem_cap = pltpu.get_tpu_info().vmem_capacity_bytes
    except Exception:
        vmem_cap = 64 * 1024 * 1024
    vmem_limit = int(vmem_cap) * 3 // 4

    itemsize = jnp.dtype(x.dtype).itemsize
    cost = pl.CostEstimate(
        flops=int(B) * HW * (3 * C + 4 * KSIZE * KSIZE),
        transcendentals=int(B) * HW,
        bytes_accessed=2 * int(B) * C * HW * itemsize + 2 * KSIZE * KSIZE * 4,
    )

    out_flat = pl.pallas_call(
        kernel,
        out_shape=jax.ShapeDtypeStruct((B_pad, C, HW_pad), x.dtype),
        grid=(B_pad // BP,),
        in_specs=[
            pl.BlockSpec(memory_space=pltpu.MemorySpace.SMEM),           # weights
            pl.BlockSpec((KSIZE, HW_pad), lambda g: (0, 0)),             # col masks
            pl.BlockSpec((KSIZE, HW_pad), lambda g: (0, 0)),             # row masks
            pl.BlockSpec((BP, C, HW_pad), lambda g: (g, 0, 0)),          # x
        ],
        out_specs=pl.BlockSpec((BP, C, HW_pad), lambda g: (g, 0, 0)),
        compiler_params=pltpu.CompilerParams(
            dimension_semantics=("parallel",),
            vmem_limit_bytes=vmem_limit),
        cost_estimate=cost,
    )(w_flat, col_mask, row_mask, x_flat)

    return out_flat[:B, :, :HW].reshape(B, C, H, W)


def spatial_attention_ref(x, conv_weight):
    """Pure-JAX reference matching the PyTorch module."""
    avg = jnp.mean(x, axis=1, keepdims=True)
    mx = jnp.max(x, axis=1, keepdims=True)
    comb = jnp.concatenate([avg, mx], axis=1)
    conv = lax.conv_general_dilated(
        comb, conv_weight, window_strides=(1, 1),
        padding=((PAD, PAD), (PAD, PAD)),
        dimension_numbers=("NCHW", "OIHW", "NCHW"))
    return x * jax.nn.sigmoid(conv)


if __name__ == "__main__":
    key = jax.random.PRNGKey(0)
    kx, kw = jax.random.split(key)

    B, C, H, W = 2, 4, 16, 16
    x = jax.random.normal(kx, (B, C, H, W), dtype=jnp.float32)

    # Deterministic conv weight init (Conv2d(2, 1, 7, bias=False) shape).
    fan_in = 2 * KSIZE * KSIZE
    bound = (1.0 / fan_in) ** 0.5
    conv_weight = jax.random.uniform(
        kw, (1, 2, KSIZE, KSIZE), dtype=jnp.float32, minval=-bound, maxval=bound)

    out = jax.block_until_ready(spatial_attention(x, conv_weight))

    ref = spatial_attention_ref(x, conv_weight)
    assert out.shape == (B, C, H, W)
    assert jnp.allclose(out, ref, atol=1e-5, rtol=1e-5), "mismatch vs reference"

    print("KERNEL_OK")
</pallas_src>

<mosaic_0001>
module attributes {stable_mosaic.version = 11 : i64} {
  func.func @spatial_attention_kernel(%arg0: i32, %arg1: memref<98xf32, #tpu.memory_space<smem>>, %arg2: memref<7x256xf32, #tpu.memory_space<vmem>>, %arg3: memref<7x256xf32, #tpu.memory_space<vmem>>, %arg4: memref<2x4x256xf32, #tpu.memory_space<vmem>>, %arg5: memref<2x4x256xf32, #tpu.memory_space<vmem>>) attributes {dimension_semantics = [#tpu.dimension_semantics<parallel>], iteration_bounds = array<i64: 1>, scalar_prefetch = 0 : i64, scratch_operands = 0 : i64, tpu.core_type = #tpu.core_type<tc>, window_params = [{transform_indices = @transform_0, window_bounds = array<i64: 98>}, {pipeline_mode = #tpu.pipeline_mode<synchronous>, transform_indices = @transform_1, window_bounds = array<i64: 7, 256>}, {pipeline_mode = #tpu.pipeline_mode<synchronous>, transform_indices = @transform_2, window_bounds = array<i64: 7, 256>}, {transform_indices = @transform_3, window_bounds = array<i64: 2, 4, 256>}, {transform_indices = @transform_4, window_bounds = array<i64: 2, 4, 256>}]} {
    %c0 = arith.constant 0 : index
    %c0_0 = arith.constant 0 : index
    %c0_1 = arith.constant 0 : index
    %0 = vector.load %arg4[%c0, %c0_0, %c0_1] : memref<2x4x256xf32, #tpu.memory_space<vmem>>, vector<2x4x256xf32>
    %cst = arith.constant dense<0.000000e+00> : vector<2x256xf32>
    %1 = vector.multi_reduction <add>, %0, %cst [1] : vector<2x4x256xf32> to vector<2x256xf32>
    %cst_2 = arith.constant dense<0xFF800000> : vector<2x256xf32>
    %2 = vector.multi_reduction <maximumf>, %0, %cst_2 [1] : vector<2x4x256xf32> to vector<2x256xf32>
    %cst_3 = arith.constant 2.500000e-01 : f32
    %3 = vector.broadcast %cst_3 : f32 to vector<2x256xf32>
    %4 = arith.mulf %1, %3 : vector<2x256xf32>
    %c3_i32 = arith.constant 3 : i32
    %5 = tpu.dynamic_rotate %4 by %c3_i32 dim 1 : vector<2x256xf32>, i32 -> vector<2x256xf32>
    %c0_4 = arith.constant 0 : index
    %c0_5 = arith.constant 0 : index
    %6 = vector.load %arg2[%c0_4, %c0_5] : memref<7x256xf32, #tpu.memory_space<vmem>>, vector<1x256xf32>
    %7 = vector.broadcast %6 : vector<1x256xf32> to vector<2x256xf32>
    %8 = arith.mulf %5, %7 : vector<2x256xf32>
    %c0_6 = arith.constant 0 : index
    %9 = memref.load %arg1[%c0_6] : memref<98xf32, #tpu.memory_space<smem>>
    %10 = vector.broadcast %9 : f32 to vector<2x256xf32>
    %11 = arith.mulf %10, %8 : vector<2x256xf32>
    %c7 = arith.constant 7 : index
    %12 = memref.load %arg1[%c7] : memref<98xf32, #tpu.memory_space<smem>>
    %13 = vector.broadcast %12 : f32 to vector<2x256xf32>
    %14 = arith.mulf %13, %8 : vector<2x256xf32>
    %c14 = arith.constant 14 : index
    %15 = memref.load %arg1[%c14] : memref<98xf32, #tpu.memory_space<smem>>
    %16 = vector.broadcast %15 : f32 to vector<2x256xf32>
    %17 = arith.mulf %16, %8 : vector<2x256xf32>
    %c21 = arith.constant 21 : index
    %18 = memref.load %arg1[%c21] : memref<98xf32, #tpu.memory_space<smem>>
    %19 = vector.broadcast %18 : f32 to vector<2x256xf32>
    %20 = arith.mulf %19, %8 : vector<2x256xf32>
    %c28 = arith.constant 28 : index
    %21 = memref.load %arg1[%c28] : memref<98xf32, #tpu.memory_space<smem>>
    %22 = vector.broadcast %21 : f32 to vector<2x256xf32>
    %23 = arith.mulf %22, %8 : vector<2x256xf32>
    %c35 = arith.constant 35 : index
    %24 = memref.load %arg1[%c35] : memref<98xf32, #tpu.memory_space<smem>>
    %25 = vector.broadcast %24 : f32 to vector<2x256xf32>
    %26 = arith.mulf %25, %8 : vector<2x256xf32>
    %c42 = arith.constant 42 : index
    %27 = memref.load %arg1[%c42] : memref<98xf32, #tpu.memory_space<smem>>
    %28 = vector.broadcast %27 : f32 to vector<2x256xf32>
    %29 = arith.mulf %28, %8 : vector<2x256xf32>
    %c2_i32 = arith.constant 2 : i32
    %30 = tpu.dynamic_rotate %4 by %c2_i32 dim 1 : vector<2x256xf32>, i32 -> vector<2x256xf32>
    %c1 = arith.constant 1 : index
    %c0_7 = arith.constant 0 : index
    %31 = vector.load %arg2[%c1, %c0_7] : memref<7x256xf32, #tpu.memory_space<vmem>>, vector<1x256xf32>
    %32 = vector.broadcast %31 : vector<1x256xf32> to vector<2x256xf32>
    %33 = arith.mulf %30, %32 : vector<2x256xf32>
    %c1_8 = arith.constant 1 : index
    %34 = memref.load %arg1[%c1_8] : memref<98xf32, #tpu.memory_space<smem>>
    %35 = vector.broadcast %34 : f32 to vector<2x256xf32>
    %36 = arith.mulf %35, %33 : vector<2x256xf32>
    %37 = arith.addf %11, %36 : vector<2x256xf32>
    %c8 = arith.constant 8 : index
    %38 = memref.load %arg1[%c8] : memref<98xf32, #tpu.memory_space<smem>>
    %39 = vector.broadcast %38 : f32 to vector<2x256xf32>
    %40 = arith.mulf %39, %33 : vector<2x256xf32>
    %41 = arith.addf %14, %40 : vector<2x256xf32>
    %c15 = arith.constant 15 : index
    %42 = memref.load %arg1[%c15] : memref<98xf32, #tpu.memory_space<smem>>
    %43 = vector.broadcast %42 : f32 to vector<2x256xf32>
    %44 = arith.mulf %43, %33 : vector<2x256xf32>
    %45 = arith.addf %17, %44 : vector<2x256xf32>
    %c22 = arith.constant 22 : index
    %46 = memref.load %arg1[%c22] : memref<98xf32, #tpu.memory_space<smem>>
    %47 = vector.broadcast %46 : f32 to vector<2x256xf32>
    %48 = arith.mulf %47, %33 : vector<2x256xf32>
    %49 = arith.addf %20, %48 : vector<2x256xf32>
    %c29 = arith.constant 29 : index
    %50 = memref.load %arg1[%c29] : memref<98xf32, #tpu.memory_space<smem>>
    %51 = vector.broadcast %50 : f32 to vector<2x256xf32>
    %52 = arith.mulf %51, %33 : vector<2x256xf32>
    %53 = arith.addf %23, %52 : vector<2x256xf32>
    %c36 = arith.constant 36 : index
    %54 = memref.load %arg1[%c36] : memref<98xf32, #tpu.memory_space<smem>>
    %55 = vector.broadcast %54 : f32 to vector<2x256xf32>
    %56 = arith.mulf %55, %33 : vector<2x256xf32>
    %57 = arith.addf %26, %56 : vector<2x256xf32>
    %c43 = arith.constant 43 : index
    %58 = memref.load %arg1[%c43] : memref<98xf32, #tpu.memory_space<smem>>
    %59 = vector.broadcast %58 : f32 to vector<2x256xf32>
    %60 = arith.mulf %59, %33 : vector<2x256xf32>
    %61 = arith.addf %29, %60 : vector<2x256xf32>
    %c1_i32 = arith.constant 1 : i32
    %62 = tpu.dynamic_rotate %4 by %c1_i32 dim 1 : vector<2x256xf32>, i32 -> vector<2x256xf32>
    %c2 = arith.constant 2 : index
    %c0_9 = arith.constant 0 : index
    %63 = vector.load %arg2[%c2, %c0_9] : memref<7x256xf32, #tpu.memory_space<vmem>>, vector<1x256xf32>
    %64 = vector.broadcast %63 : vector<1x256xf32> to vector<2x256xf32>
    %65 = arith.mulf %62, %64 : vector<2x256xf32>
    %c2_10 = arith.constant 2 : index
    %66 = memref.load %arg1[%c2_10] : memref<98xf32, #tpu.memory_space<smem>>
    %67 = vector.broadcast %66 : f32 to vector<2x256xf32>
    %68 = arith.mulf %67, %65 : vector<2x256xf32>
    %69 = arith.addf %37, %68 : vector<2x256xf32>
    %c9 = arith.constant 9 : index
    %70 = memref.load %arg1[%c9] : memref<98xf32, #tpu.memory_space<smem>>
    %71 = vector.broadcast %70 : f32 to vector<2x256xf32>
    %72 = arith.mulf %71, %65 : vector<2x256xf32>
    %73 = arith.addf %41, %72 : vector<2x256xf32>
    %c16 = arith.constant 16 : index
    %74 = memref.load %arg1[%c16] : memref<98xf32, #tpu.memory_space<smem>>
    %75 = vector.broadcast %74 : f32 to vector<2x256xf32>
    %76 = arith.mulf %75, %65 : vector<2x256xf32>
    %77 = arith.addf %45, %76 : vector<2x256xf32>
    %c23 = arith.constant 23 : index
    %78 = memref.load %arg1[%c23] : memref<98xf32, #tpu.memory_space<smem>>
    %79 = vector.broadcast %78 : f32 to vector<2x256xf32>
    %80 = arith.mulf %79, %65 : vector<2x256xf32>
    %81 = arith.addf %49, %80 : vector<2x256xf32>
    %c30 = arith.constant 30 : index
    %82 = memref.load %arg1[%c30] : memref<98xf32, #tpu.memory_space<smem>>
    %83 = vector.broadcast %82 : f32 to vector<2x256xf32>
    %84 = arith.mulf %83, %65 : vector<2x256xf32>
    %85 = arith.addf %53, %84 : vector<2x256xf32>
    %c37 = arith.constant 37 : index
    %86 = memref.load %arg1[%c37] : memref<98xf32, #tpu.memory_space<smem>>
    %87 = vector.broadcast %86 : f32 to vector<2x256xf32>
    %88 = arith.mulf %87, %65 : vector<2x256xf32>
    %89 = arith.addf %57, %88 : vector<2x256xf32>
    %c44 = arith.constant 44 : index
    %90 = memref.load %arg1[%c44] : memref<98xf32, #tpu.memory_space<smem>>
    %91 = vector.broadcast %90 : f32 to vector<2x256xf32>
    %92 = arith.mulf %91, %65 : vector<2x256xf32>
    %93 = arith.addf %61, %92 : vector<2x256xf32>
    %c3 = arith.constant 3 : index
    %94 = memref.load %arg1[%c3] : memref<98xf32, #tpu.memory_space<smem>>
    %95 = vector.broadcast %94 : f32 to vector<2x256xf32>
    %96 = arith.mulf %95, %4 : vector<2x256xf32>
    %97 = arith.addf %69, %96 : vector<2x256xf32>
    %c10 = arith.constant 10 : index
    %98 = memref.load %arg1[%c10] : memref<98xf32, #tpu.memory_space<smem>>
    %99 = vector.broadcast %98 : f32 to vector<2x256xf32>
    %100 = arith.mulf %99, %4 : vector<2x256xf32>
    %101 = arith.addf %73, %100 : vector<2x256xf32>
    %c17 = arith.constant 17 : index
    %102 = memref.load %arg1[%c17] : memref<98xf32, #tpu.memory_space<smem>>
    %103 = vector.broadcast %102 : f32 to vector<2x256xf32>
    %104 = arith.mulf %103, %4 : vector<2x256xf32>
    %105 = arith.addf %77, %104 : vector<2x256xf32>
    %c24 = arith.constant 24 : index
    %106 = memref.load %arg1[%c24] : memref<98xf32, #tpu.memory_space<smem>>
    %107 = vector.broadcast %106 : f32 to vector<2x256xf32>
    %108 = arith.mulf %107, %4 : vector<2x256xf32>
    %109 = arith.addf %81, %108 : vector<2x256xf32>
    %c31 = arith.constant 31 : index
    %110 = memref.load %arg1[%c31] : memref<98xf32, #tpu.memory_space<smem>>
    %111 = vector.broadcast %110 : f32 to vector<2x256xf32>
    %112 = arith.mulf %111, %4 : vector<2x256xf32>
    %113 = arith.addf %85, %112 : vector<2x256xf32>
    %c38 = arith.constant 38 : index
    %114 = memref.load %arg1[%c38] : memref<98xf32, #tpu.memory_space<smem>>
    %115 = vector.broadcast %114 : f32 to vector<2x256xf32>
    %116 = arith.mulf %115, %4 : vector<2x256xf32>
    %117 = arith.addf %89, %116 : vector<2x256xf32>
    %c45 = arith.constant 45 : index
    %118 = memref.load %arg1[%c45] : memref<98xf32, #tpu.memory_space<smem>>
    %119 = vector.broadcast %118 : f32 to vector<2x256xf32>
    %120 = arith.mulf %119, %4 : vector<2x256xf32>
    %121 = arith.addf %93, %120 : vector<2x256xf32>
    %c255_i32 = arith.constant 255 : i32
    %122 = tpu.dynamic_rotate %4 by %c255_i32 dim 1 : vector<2x256xf32>, i32 -> vector<2x256xf32>
    %c4 = arith.constant 4 : index
    %c0_11 = arith.constant 0 : index
    %123 = vector.load %arg2[%c4, %c0_11] : memref<7x256xf32, #tpu.memory_space<vmem>>, vector<1x256xf32>
    %124 = vector.broadcast %123 : vector<1x256xf32> to vector<2x256xf32>
    %125 = arith.mulf %122, %124 : vector<2x256xf32>
    %c4_12 = arith.constant 4 : index
    %126 = memref.load %arg1[%c4_12] : memref<98xf32, #tpu.memory_space<smem>>
    %127 = vector.broadcast %126 : f32 to vector<2x256xf32>
    %128 = arith.mulf %127, %125 : vector<2x256xf32>
    %129 = arith.addf %97, %128 : vector<2x256xf32>
    %c11 = arith.constant 11 : index
    %130 = memref.load %arg1[%c11] : memref<98xf32, #tpu.memory_space<smem>>
    %131 = vector.broadcast %130 : f32 to vector<2x256xf32>
    %132 = arith.mulf %131, %125 : vector<2x256xf32>
    %133 = arith.addf %101, %132 : vector<2x256xf32>
    %c18 = arith.constant 18 : index
    %134 = memref.load %arg1[%c18] : memref<98xf32, #tpu.memory_space<smem>>
    %135 = vector.broadcast %134 : f32 to vector<2x256xf32>
    %136 = arith.mulf %135, %125 : vector<2x256xf32>
    %137 = arith.addf %105, %136 : vector<2x256xf32>
    %c25 = arith.constant 25 : index
    %138 = memref.load %arg1[%c25] : memref<98xf32, #tpu.memory_space<smem>>
    %139 = vector.broadcast %138 : f32 to vector<2x256xf32>
    %140 = arith.mulf %139, %125 : vector<2x256xf32>
    %141 = arith.addf %109, %140 : vector<2x256xf32>
    %c32 = arith.constant 32 : index
    %142 = memref.load %arg1[%c32] : memref<98xf32, #tpu.memory_space<smem>>
    %143 = vector.broadcast %142 : f32 to vector<2x256xf32>
    %144 = arith.mulf %143, %125 : vector<2x256xf32>
    %145 = arith.addf %113, %144 : vector<2x256xf32>
    %c39 = arith.constant 39 : index
    %146 = memref.load %arg1[%c39] : memref<98xf32, #tpu.memory_space<smem>>
    %147 = vector.broadcast %146 : f32 to vector<2x256xf32>
    %148 = arith.mulf %147, %125 : vector<2x256xf32>
    %149 = arith.addf %117, %148 : vector<2x256xf32>
    %c46 = arith.constant 46 : index
    %150 = memref.load %arg1[%c46] : memref<98xf32, #tpu.memory_space<smem>>
    %151 = vector.broadcast %150 : f32 to vector<2x256xf32>
    %152 = arith.mulf %151, %125 : vector<2x256xf32>
    %153 = arith.addf %121, %152 : vector<2x256xf32>
    %c254_i32 = arith.constant 254 : i32
    %154 = tpu.dynamic_rotate %4 by %c254_i32 dim 1 : vector<2x256xf32>, i32 -> vector<2x256xf32>
    %c5 = arith.constant 5 : index
    %c0_13 = arith.constant 0 : index
    %155 = vector.load %arg2[%c5, %c0_13] : memref<7x256xf32, #tpu.memory_space<vmem>>, vector<1x256xf32>
    %156 = vector.broadcast %155 : vector<1x256xf32> to vector<2x256xf32>
    %157 = arith.mulf %154, %156 : vector<2x256xf32>
    %c5_14 = arith.constant 5 : index
    %158 = memref.load %arg1[%c5_14] : memref<98xf32, #tpu.memory_space<smem>>
    %159 = vector.broadcast %158 : f32 to vector<2x256xf32>
    %160 = arith.mulf %159, %157 : vector<2x256xf32>
    %161 = arith.addf %129, %160 : vector<2x256xf32>
    %c12 = arith.constant 12 : index
    %162 = memref.load %arg1[%c12] : memref<98xf32, #tpu.memory_space<smem>>
    %163 = vector.broadcast %162 : f32 to vector<2x256xf32>
    %164 = arith.mulf %163, %157 : vector<2x256xf32>
    %165 = arith.addf %133, %164 : vector<2x256xf32>
    %c19 = arith.constant 19 : index
    %166 = memref.load %arg1[%c19] : memref<98xf32, #tpu.memory_space<smem>>
    %167 = vector.broadcast %166 : f32 to vector<2x256xf32>
    %168 = arith.mulf %167, %157 : vector<2x256xf32>
    %169 = arith.addf %137, %168 : vector<2x256xf32>
    %c26 = arith.constant 26 : index
    %170 = memref.load %arg1[%c26] : memref<98xf32, #tpu.memory_space<smem>>
    %171 = vector.broadcast %170 : f32 to vector<2x256xf32>
    %172 = arith.mulf %171, %157 : vector<2x256xf32>
    %173 = arith.addf %141, %172 : vector<2x256xf32>
    %c33 = arith.constant 33 : index
    %174 = memref.load %arg1[%c33] : memref<98xf32, #tpu.memory_space<smem>>
    %175 = vector.broadcast %174 : f32 to vector<2x256xf32>
    %176 = arith.mulf %175, %157 : vector<2x256xf32>
    %177 = arith.addf %145, %176 : vector<2x256xf32>
    %c40 = arith.constant 40 : index
    %178 = memref.load %arg1[%c40] : memref<98xf32, #tpu.memory_space<smem>>
    %179 = vector.broadcast %178 : f32 to vector<2x256xf32>
    %180 = arith.mulf %179, %157 : vector<2x256xf32>
    %181 = arith.addf %149, %180 : vector<2x256xf32>
    %c47 = arith.constant 47 : index
    %182 = memref.load %arg1[%c47] : memref<98xf32, #tpu.memory_space<smem>>
    %183 = vector.broadcast %182 : f32 to vector<2x256xf32>
    %184 = arith.mulf %183, %157 : vector<2x256xf32>
    %185 = arith.addf %153, %184 : vector<2x256xf32>
    %c253_i32 = arith.constant 253 : i32
    %186 = tpu.dynamic_rotate %4 by %c253_i32 dim 1 : vector<2x256xf32>, i32 -> vector<2x256xf32>
    %c6 = arith.constant 6 : index
    %c0_15 = arith.constant 0 : index
    %187 = vector.load %arg2[%c6, %c0_15] : memref<7x256xf32, #tpu.memory_space<vmem>>, vector<1x256xf32>
    %188 = vector.broadcast %187 : vector<1x256xf32> to vector<2x256xf32>
    %189 = arith.mulf %186, %188 : vector<2x256xf32>
    %c6_16 = arith.constant 6 : index
    %190 = memref.load %arg1[%c6_16] : memref<98xf32, #tpu.memory_space<smem>>
    %191 = vector.broadcast %190 : f32 to vector<2x256xf32>
    %192 = arith.mulf %191, %189 : vector<2x256xf32>
    %193 = arith.addf %161, %192 : vector<2x256xf32>
    %c13 = arith.constant 13 : index
    %194 = memref.load %arg1[%c13] : memref<98xf32, #tpu.memory_space<smem>>
    %195 = vector.broadcast %194 : f32 to vector<2x256xf32>
    %196 = arith.mulf %195, %189 : vector<2x256xf32>
    %197 = arith.addf %165, %196 : vector<2x256xf32>
    %c20 = arith.constant 20 : index
    %198 = memref.load %arg1[%c20] : memref<98xf32, #tpu.memory_space<smem>>
    %199 = vector.broadcast %198 : f32 to vector<2x256xf32>
    %200 = arith.mulf %199, %189 : vector<2x256xf32>
    %201 = arith.addf %169, %200 : vector<2x256xf32>
    %c27 = arith.constant 27 : index
    %202 = memref.load %arg1[%c27] : memref<98xf32, #tpu.memory_space<smem>>
    %203 = vector.broadcast %202 : f32 to vector<2x256xf32>
    %204 = arith.mulf %203, %189 : vector<2x256xf32>
    %205 = arith.addf %173, %204 : vector<2x256xf32>
    %c34 = arith.constant 34 : index
    %206 = memref.load %arg1[%c34] : memref<98xf32, #tpu.memory_space<smem>>
    %207 = vector.broadcast %206 : f32 to vector<2x256xf32>
    %208 = arith.mulf %207, %189 : vector<2x256xf32>
    %209 = arith.addf %177, %208 : vector<2x256xf32>
    %c41 = arith.constant 41 : index
    %210 = memref.load %arg1[%c41] : memref<98xf32, #tpu.memory_space<smem>>
    %211 = vector.broadcast %210 : f32 to vector<2x256xf32>
    %212 = arith.mulf %211, %189 : vector<2x256xf32>
    %213 = arith.addf %181, %212 : vector<2x256xf32>
    %c48 = arith.constant 48 : index
    %214 = memref.load %arg1[%c48] : memref<98xf32, #tpu.memory_space<smem>>
    %215 = vector.broadcast %214 : f32 to vector<2x256xf32>
    %216 = arith.mulf %215, %189 : vector<2x256xf32>
    %217 = arith.addf %185, %216 : vector<2x256xf32>
    %c3_i32_17 = arith.constant 3 : i32
    %218 = tpu.dynamic_rotate %2 by %c3_i32_17 dim 1 : vector<2x256xf32>, i32 -> vector<2x256xf32>
    %c0_18 = arith.constant 0 : index
    %c0_19 = arith.constant 0 : index
    %219 = vector.load %arg2[%c0_18, %c0_19] : memref<7x256xf32, #tpu.memory_space<vmem>>, vector<1x256xf32>
    %220 = vector.broadcast %219 : vector<1x256xf32> to vector<2x256xf32>
    %221 = arith.mulf %218, %220 : vector<2x256xf32>
    %c49 = arith.constant 49 : index
    %222 = memref.load %arg1[%c49] : memref<98xf32, #tpu.memory_space<smem>>
    %223 = vector.broadcast %222 : f32 to vector<2x256xf32>
    %224 = arith.mulf %223, %221 : vector<2x256xf32>
    %225 = arith.addf %193, %224 : vector<2x256xf32>
    %c56 = arith.constant 56 : index
    %226 = memref.load %arg1[%c56] : memref<98xf32, #tpu.memory_space<smem>>
    %227 = vector.broadcast %226 : f32 to vector<2x256xf32>
    %228 = arith.mulf %227, %221 : vector<2x256xf32>
    %229 = arith.addf %197, %228 : vector<2x256xf32>
    %c63 = arith.constant 63 : index
    %230 = memref.load %arg1[%c63] : memref<98xf32, #tpu.memory_space<smem>>
    %231 = vector.broadcast %230 : f32 to vector<2x256xf32>
    %232 = arith.mulf %231, %221 : vector<2x256xf32>
    %233 = arith.addf %201, %232 : vector<2x256xf32>
    %c70 = arith.constant 70 : index
    %234 = memref.load %arg1[%c70] : memref<98xf32, #tpu.memory_space<smem>>
    %235 = vector.broadcast %234 : f32 to vector<2x256xf32>
    %236 = arith.mulf %235, %221 : vector<2x256xf32>
    %237 = arith.addf %205, %236 : vector<2x256xf32>
    %c77 = arith.constant 77 : index
    %238 = memref.load %arg1[%c77] : memref<98xf32, #tpu.memory_space<smem>>
    %239 = vector.broadcast %238 : f32 to vector<2x256xf32>
    %240 = arith.mulf %239, %221 : vector<2x256xf32>
    %241 = arith.addf %209, %240 : vector<2x256xf32>
    %c84 = arith.constant 84 : index
    %242 = memref.load %arg1[%c84] : memref<98xf32, #tpu.memory_space<smem>>
    %243 = vector.broadcast %242 : f32 to vector<2x256xf32>
    %244 = arith.mulf %243, %221 : vector<2x256xf32>
    %245 = arith.addf %213, %244 : vector<2x256xf32>
    %c91 = arith.constant 91 : index
    %246 = memref.load %arg1[%c91] : memref<98xf32, #tpu.memory_space<smem>>
    %247 = vector.broadcast %246 : f32 to vector<2x256xf32>
    %248 = arith.mulf %247, %221 : vector<2x256xf32>
    %249 = arith.addf %217, %248 : vector<2x256xf32>
    %c2_i32_20 = arith.constant 2 : i32
    %250 = tpu.dynamic_rotate %2 by %c2_i32_20 dim 1 : vector<2x256xf32>, i32 -> vector<2x256xf32>
    %c1_21 = arith.constant 1 : index
    %c0_22 = arith.constant 0 : index
    %251 = vector.load %arg2[%c1_21, %c0_22] : memref<7x256xf32, #tpu.memory_space<vmem>>, vector<1x256xf32>
    %252 = vector.broadcast %251 : vector<1x256xf32> to vector<2x256xf32>
    %253 = arith.mulf %250, %252 : vector<2x256xf32>
    %c50 = arith.constant 50 : index
    %254 = memref.load %arg1[%c50] : memref<98xf32, #tpu.memory_space<smem>>
    %255 = vector.broadcast %254 : f32 to vector<2x256xf32>
    %256 = arith.mulf %255, %253 : vector<2x256xf32>
    %257 = arith.addf %225, %256 : vector<2x256xf32>
    %c57 = arith.constant 57 : index
    %258 = memref.load %arg1[%c57] : memref<98xf32, #tpu.memory_space<smem>>
    %259 = vector.broadcast %258 : f32 to vector<2x256xf32>
    %260 = arith.mulf %259, %253 : vector<2x256xf32>
    %261 = arith.addf %229, %260 : vector<2x256xf32>
    %c64 = arith.constant 64 : index
    %262 = memref.load %arg1[%c64] : memref<98xf32, #tpu.memory_space<smem>>
    %263 = vector.broadcast %262 : f32 to vector<2x256xf32>
    %264 = arith.mulf %263, %253 : vector<2x256xf32>
    %265 = arith.addf %233, %264 : vector<2x256xf32>
    %c71 = arith.constant 71 : index
    %266 = memref.load %arg1[%c71] : memref<98xf32, #tpu.memory_space<smem>>
    %267 = vector.broadcast %266 : f32 to vector<2x256xf32>
    %268 = arith.mulf %267, %253 : vector<2x256xf32>
    %269 = arith.addf %237, %268 : vector<2x256xf32>
    %c78 = arith.constant 78 : index
    %270 = memref.load %arg1[%c78] : memref<98xf32, #tpu.memory_space<smem>>
    %271 = vector.broadcast %270 : f32 to vector<2x256xf32>
    %272 = arith.mulf %271, %253 : vector<2x256xf32>
    %273 = arith.addf %241, %272 : vector<2x256xf32>
    %c85 = arith.constant 85 : index
    %274 = memref.load %arg1[%c85] : memref<98xf32, #tpu.memory_space<smem>>
    %275 = vector.broadcast %274 : f32 to vector<2x256xf32>
    %276 = arith.mulf %275, %253 : vector<2x256xf32>
    %277 = arith.addf %245, %276 : vector<2x256xf32>
    %c92 = arith.constant 92 : index
    %278 = memref.load %arg1[%c92] : memref<98xf32, #tpu.memory_space<smem>>
    %279 = vector.broadcast %278 : f32 to vector<2x256xf32>
    %280 = arith.mulf %279, %253 : vector<2x256xf32>
    %281 = arith.addf %249, %280 : vector<2x256xf32>
    %c1_i32_23 = arith.constant 1 : i32
    %282 = tpu.dynamic_rotate %2 by %c1_i32_23 dim 1 : vector<2x256xf32>, i32 -> vector<2x256xf32>
    %c2_24 = arith.constant 2 : index
    %c0_25 = arith.constant 0 : index
    %283 = vector.load %arg2[%c2_24, %c0_25] : memref<7x256xf32, #tpu.memory_space<vmem>>, vector<1x256xf32>
    %284 = vector.broadcast %283 : vector<1x256xf32> to vector<2x256xf32>
    %285 = arith.mulf %282, %284 : vector<2x256xf32>
    %c51 = arith.constant 51 : index
    %286 = memref.load %arg1[%c51] : memref<98xf32, #tpu.memory_space<smem>>
    %287 = vector.broadcast %286 : f32 to vector<2x256xf32>
    %288 = arith.mulf %287, %285 : vector<2x256xf32>
    %289 = arith.addf %257, %288 : vector<2x256xf32>
    %c58 = arith.constant 58 : index
    %290 = memref.load %arg1[%c58] : memref<98xf32, #tpu.memory_space<smem>>
    %291 = vector.broadcast %290 : f32 to vector<2x256xf32>
    %292 = arith.mulf %291, %285 : vector<2x256xf32>
    %293 = arith.addf %261, %292 : vector<2x256xf32>
    %c65 = arith.constant 65 : index
    %294 = memref.load %arg1[%c65] : memref<98xf32, #tpu.memory_space<smem>>
    %295 = vector.broadcast %294 : f32 to vector<2x256xf32>
    %296 = arith.mulf %295, %285 : vector<2x256xf32>
    %297 = arith.addf %265, %296 : vector<2x256xf32>
    %c72 = arith.constant 72 : index
    %298 = memref.load %arg1[%c72] : memref<98xf32, #tpu.memory_space<smem>>
    %299 = vector.broadcast %298 : f32 to vector<2x256xf32>
    %300 = arith.mulf %299, %285 : vector<2x256xf32>
    %301 = arith.addf %269, %300 : vector<2x256xf32>
    %c79 = arith.constant 79 : index
    %302 = memref.load %arg1[%c79] : memref<98xf32, #tpu.memory_space<smem>>
    %303 = vector.broadcast %302 : f32 to vector<2x256xf32>
    %304 = arith.mulf %303, %285 : vector<2x256xf32>
    %305 = arith.addf %273, %304 : vector<2x256xf32>
    %c86 = arith.constant 86 : index
    %306 = memref.load %arg1[%c86] : memref<98xf32, #tpu.memory_space<smem>>
    %307 = vector.broadcast %306 : f32 to vector<2x256xf32>
    %308 = arith.mulf %307, %285 : vector<2x256xf32>
    %309 = arith.addf %277, %308 : vector<2x256xf32>
    %c93 = arith.constant 93 : index
    %310 = memref.load %arg1[%c93] : memref<98xf32, #tpu.memory_space<smem>>
    %311 = vector.broadcast %310 : f32 to vector<2x256xf32>
    %312 = arith.mulf %311, %285 : vector<2x256xf32>
    %313 = arith.addf %281, %312 : vector<2x256xf32>
    %c52 = arith.constant 52 : index
    %314 = memref.load %arg1[%c52] : memref<98xf32, #tpu.memory_space<smem>>
    %315 = vector.broadcast %314 : f32 to vector<2x256xf32>
    %316 = arith.mulf %315, %2 : vector<2x256xf32>
    %317 = arith.addf %289, %316 : vector<2x256xf32>
    %c59 = arith.constant 59 : index
    %318 = memref.load %arg1[%c59] : memref<98xf32, #tpu.memory_space<smem>>
    %319 = vector.broadcast %318 : f32 to vector<2x256xf32>
    %320 = arith.mulf %319, %2 : vector<2x256xf32>
    %321 = arith.addf %293, %320 : vector<2x256xf32>
    %c66 = arith.constant 66 : index
    %322 = memref.load %arg1[%c66] : memref<98xf32, #tpu.memory_space<smem>>
    %323 = vector.broadcast %322 : f32 to vector<2x256xf32>
    %324 = arith.mulf %323, %2 : vector<2x256xf32>
    %325 = arith.addf %297, %324 : vector<2x256xf32>
    %c73 = arith.constant 73 : index
    %326 = memref.load %arg1[%c73] : memref<98xf32, #tpu.memory_space<smem>>
    %327 = vector.broadcast %326 : f32 to vector<2x256xf32>
    %328 = arith.mulf %327, %2 : vector<2x256xf32>
    %329 = arith.addf %301, %328 : vector<2x256xf32>
    %c80 = arith.constant 80 : index
    %330 = memref.load %arg1[%c80] : memref<98xf32, #tpu.memory_space<smem>>
    %331 = vector.broadcast %330 : f32 to vector<2x256xf32>
    %332 = arith.mulf %331, %2 : vector<2x256xf32>
    %333 = arith.addf %305, %332 : vector<2x256xf32>
    %c87 = arith.constant 87 : index
    %334 = memref.load %arg1[%c87] : memref<98xf32, #tpu.memory_space<smem>>
    %335 = vector.broadcast %334 : f32 to vector<2x256xf32>
    %336 = arith.mulf %335, %2 : vector<2x256xf32>
    %337 = arith.addf %309, %336 : vector<2x256xf32>
    %c94 = arith.constant 94 : index
    %338 = memref.load %arg1[%c94] : memref<98xf32, #tpu.memory_space<smem>>
    %339 = vector.broadcast %338 : f32 to vector<2x256xf32>
    %340 = arith.mulf %339, %2 : vector<2x256xf32>
    %341 = arith.addf %313, %340 : vector<2x256xf32>
    %c255_i32_26 = arith.constant 255 : i32
    %342 = tpu.dynamic_rotate %2 by %c255_i32_26 dim 1 : vector<2x256xf32>, i32 -> vector<2x256xf32>
    %c4_27 = arith.constant 4 : index
    %c0_28 = arith.constant 0 : index
    %343 = vector.load %arg2[%c4_27, %c0_28] : memref<7x256xf32, #tpu.memory_space<vmem>>, vector<1x256xf32>
    %344 = vector.broadcast %343 : vector<1x256xf32> to vector<2x256xf32>
    %345 = arith.mulf %342, %344 : vector<2x256xf32>
    %c53 = arith.constant 53 : index
    %346 = memref.load %arg1[%c53] : memref<98xf32, #tpu.memory_space<smem>>
    %347 = vector.broadcast %346 : f32 to vector<2x256xf32>
    %348 = arith.mulf %347, %345 : vector<2x256xf32>
    %349 = arith.addf %317, %348 : vector<2x256xf32>
    %c60 = arith.constant 60 : index
    %350 = memref.load %arg1[%c60] : memref<98xf32, #tpu.memory_space<smem>>
    %351 = vector.broadcast %350 : f32 to vector<2x256xf32>
    %352 = arith.mulf %351, %345 : vector<2x256xf32>
    %353 = arith.addf %321, %352 : vector<2x256xf32>
    %c67 = arith.constant 67 : index
    %354 = memref.load %arg1[%c67] : memref<98xf32, #tpu.memory_space<smem>>
    %355 = vector.broadcast %354 : f32 to vector<2x256xf32>
    %356 = arith.mulf %355, %345 : vector<2x256xf32>
    %357 = arith.addf %325, %356 : vector<2x256xf32>
    %c74 = arith.constant 74 : index
    %358 = memref.load %arg1[%c74] : memref<98xf32, #tpu.memory_space<smem>>
    %359 = vector.broadcast %358 : f32 to vector<2x256xf32>
    %360 = arith.mulf %359, %345 : vector<2x256xf32>
    %361 = arith.addf %329, %360 : vector<2x256xf32>
    %c81 = arith.constant 81 : index
    %362 = memref.load %arg1[%c81] : memref<98xf32, #tpu.memory_space<smem>>
    %363 = vector.broadcast %362 : f32 to vector<2x256xf32>
    %364 = arith.mulf %363, %345 : vector<2x256xf32>
    %365 = arith.addf %333, %364 : vector<2x256xf32>
    %c88 = arith.constant 88 : index
    %366 = memref.load %arg1[%c88] : memref<98xf32, #tpu.memory_space<smem>>
    %367 = vector.broadcast %366 : f32 to vector<2x256xf32>
    %368 = arith.mulf %367, %345 : vector<2x256xf32>
    %369 = arith.addf %337, %368 : vector<2x256xf32>
    %c95 = arith.constant 95 : index
    %370 = memref.load %arg1[%c95] : memref<98xf32, #tpu.memory_space<smem>>
    %371 = vector.broadcast %370 : f32 to vector<2x256xf32>
    %372 = arith.mulf %371, %345 : vector<2x256xf32>
    %373 = arith.addf %341, %372 : vector<2x256xf32>
    %c254_i32_29 = arith.constant 254 : i32
    %374 = tpu.dynamic_rotate %2 by %c254_i32_29 dim 1 : vector<2x256xf32>, i32 -> vector<2x256xf32>
    %c5_30 = arith.constant 5 : index
    %c0_31 = arith.constant 0 : index
    %375 = vector.load %arg2[%c5_30, %c0_31] : memref<7x256xf32, #tpu.memory_space<vmem>>, vector<1x256xf32>
    %376 = vector.broadcast %375 : vector<1x256xf32> to vector<2x256xf32>
    %377 = arith.mulf %374, %376 : vector<2x256xf32>
    %c54 = arith.constant 54 : index
    %378 = memref.load %arg1[%c54] : memref<98xf32, #tpu.memory_space<smem>>
    %379 = vector.broadcast %378 : f32 to vector<2x256xf32>
    %380 = arith.mulf %379, %377 : vector<2x256xf32>
    %381 = arith.addf %349, %380 : vector<2x256xf32>
    %c61 = arith.constant 61 : index
    %382 = memref.load %arg1[%c61] : memref<98xf32, #tpu.memory_space<smem>>
    %383 = vector.broadcast %382 : f32 to vector<2x256xf32>
    %384 = arith.mulf %383, %377 : vector<2x256xf32>
    %385 = arith.addf %353, %384 : vector<2x256xf32>
    %c68 = arith.constant 68 : index
    %386 = memref.load %arg1[%c68] : memref<98xf32, #tpu.memory_space<smem>>
    %387 = vector.broadcast %386 : f32 to vector<2x256xf32>
    %388 = arith.mulf %387, %377 : vector<2x256xf32>
    %389 = arith.addf %357, %388 : vector<2x256xf32>
    %c75 = arith.constant 75 : index
    %390 = memref.load %arg1[%c75] : memref<98xf32, #tpu.memory_space<smem>>
    %391 = vector.broadcast %390 : f32 to vector<2x256xf32>
    %392 = arith.mulf %391, %377 : vector<2x256xf32>
    %393 = arith.addf %361, %392 : vector<2x256xf32>
    %c82 = arith.constant 82 : index
    %394 = memref.load %arg1[%c82] : memref<98xf32, #tpu.memory_space<smem>>
    %395 = vector.broadcast %394 : f32 to vector<2x256xf32>
    %396 = arith.mulf %395, %377 : vector<2x256xf32>
    %397 = arith.addf %365, %396 : vector<2x256xf32>
    %c89 = arith.constant 89 : index
    %398 = memref.load %arg1[%c89] : memref<98xf32, #tpu.memory_space<smem>>
    %399 = vector.broadcast %398 : f32 to vector<2x256xf32>
    %400 = arith.mulf %399, %377 : vector<2x256xf32>
    %401 = arith.addf %369, %400 : vector<2x256xf32>
    %c96 = arith.constant 96 : index
    %402 = memref.load %arg1[%c96] : memref<98xf32, #tpu.memory_space<smem>>
    %403 = vector.broadcast %402 : f32 to vector<2x256xf32>
    %404 = arith.mulf %403, %377 : vector<2x256xf32>
    %405 = arith.addf %373, %404 : vector<2x256xf32>
    %c253_i32_32 = arith.constant 253 : i32
    %406 = tpu.dynamic_rotate %2 by %c253_i32_32 dim 1 : vector<2x256xf32>, i32 -> vector<2x256xf32>
    %c6_33 = arith.constant 6 : index
    %c0_34 = arith.constant 0 : index
    %407 = vector.load %arg2[%c6_33, %c0_34] : memref<7x256xf32, #tpu.memory_space<vmem>>, vector<1x256xf32>
    %408 = vector.broadcast %407 : vector<1x256xf32> to vector<2x256xf32>
    %409 = arith.mulf %406, %408 : vector<2x256xf32>
    %c55 = arith.constant 55 : index
    %410 = memref.load %arg1[%c55] : memref<98xf32, #tpu.memory_space<smem>>
    %411 = vector.broadcast %410 : f32 to vector<2x256xf32>
    %412 = arith.mulf %411, %409 : vector<2x256xf32>
    %413 = arith.addf %381, %412 : vector<2x256xf32>
    %c62 = arith.constant 62 : index
    %414 = memref.load %arg1[%c62] : memref<98xf32, #tpu.memory_space<smem>>
    %415 = vector.broadcast %414 : f32 to vector<2x256xf32>
    %416 = arith.mulf %415, %409 : vector<2x256xf32>
    %417 = arith.addf %385, %416 : vector<2x256xf32>
    %c69 = arith.constant 69 : index
    %418 = memref.load %arg1[%c69] : memref<98xf32, #tpu.memory_space<smem>>
    %419 = vector.broadcast %418 : f32 to vector<2x256xf32>
    %420 = arith.mulf %419, %409 : vector<2x256xf32>
    %421 = arith.addf %389, %420 : vector<2x256xf32>
    %c76 = arith.constant 76 : index
    %422 = memref.load %arg1[%c76] : memref<98xf32, #tpu.memory_space<smem>>
    %423 = vector.broadcast %422 : f32 to vector<2x256xf32>
    %424 = arith.mulf %423, %409 : vector<2x256xf32>
    %425 = arith.addf %393, %424 : vector<2x256xf32>
    %c83 = arith.constant 83 : index
    %426 = memref.load %arg1[%c83] : memref<98xf32, #tpu.memory_space<smem>>
    %427 = vector.broadcast %426 : f32 to vector<2x256xf32>
    %428 = arith.mulf %427, %409 : vector<2x256xf32>
    %429 = arith.addf %397, %428 : vector<2x256xf32>
    %c90 = arith.constant 90 : index
    %430 = memref.load %arg1[%c90] : memref<98xf32, #tpu.memory_space<smem>>
    %431 = vector.broadcast %430 : f32 to vector<2x256xf32>
    %432 = arith.mulf %431, %409 : vector<2x256xf32>
    %433 = arith.addf %401, %432 : vector<2x256xf32>
    %c97 = arith.constant 97 : index
    %434 = memref.load %arg1[%c97] : memref<98xf32, #tpu.memory_space<smem>>
    %435 = vector.broadcast %434 : f32 to vector<2x256xf32>
    %436 = arith.mulf %435, %409 : vector<2x256xf32>
    %437 = arith.addf %405, %436 : vector<2x256xf32>
    %c48_i32 = arith.constant 48 : i32
    %438 = tpu.dynamic_rotate %413 by %c48_i32 dim 1 : vector<2x256xf32>, i32 -> vector<2x256xf32>
    %c0_35 = arith.constant 0 : index
    %c0_36 = arith.constant 0 : index
    %439 = vector.load %arg3[%c0_35, %c0_36] : memref<7x256xf32, #tpu.memory_space<vmem>>, vector<1x256xf32>
    %440 = vector.broadcast %439 : vector<1x256xf32> to vector<2x256xf32>
    %441 = arith.mulf %438, %440 : vector<2x256xf32>
    %c32_i32 = arith.constant 32 : i32
    %442 = tpu.dynamic_rotate %417 by %c32_i32 dim 1 : vector<2x256xf32>, i32 -> vector<2x256xf32>
    %c1_37 = arith.constant 1 : index
    %c0_38 = arith.constant 0 : index
    %443 = vector.load %arg3[%c1_37, %c0_38] : memref<7x256xf32, #tpu.memory_space<vmem>>, vector<1x256xf32>
    %444 = vector.broadcast %443 : vector<1x256xf32> to vector<2x256xf32>
    %445 = arith.mulf %442, %444 : vector<2x256xf32>
    %446 = arith.addf %441, %445 : vector<2x256xf32>
    %c16_i32 = arith.constant 16 : i32
    %447 = tpu.dynamic_rotate %421 by %c16_i32 dim 1 : vector<2x256xf32>, i32 -> vector<2x256xf32>
    %c2_39 = arith.constant 2 : index
    %c0_40 = arith.constant 0 : index
    %448 = vector.load %arg3[%c2_39, %c0_40] : memref<7x256xf32, #tpu.memory_space<vmem>>, vector<1x256xf32>
    %449 = vector.broadcast %448 : vector<1x256xf32> to vector<2x256xf32>
    %450 = arith.mulf %447, %449 : vector<2x256xf32>
    %451 = arith.addf %446, %450 : vector<2x256xf32>
    %452 = arith.addf %451, %425 : vector<2x256xf32>
    %c240_i32 = arith.constant 240 : i32
    %453 = tpu.dynamic_rotate %429 by %c240_i32 dim 1 : vector<2x256xf32>, i32 -> vector<2x256xf32>
    %c4_41 = arith.constant 4 : index
    %c0_42 = arith.constant 0 : index
    %454 = vector.load %arg3[%c4_41, %c0_42] : memref<7x256xf32, #tpu.memory_space<vmem>>, vector<1x256xf32>
    %455 = vector.broadcast %454 : vector<1x256xf32> to vector<2x256xf32>
    %456 = arith.mulf %453, %455 : vector<2x256xf32>
    %457 = arith.addf %452, %456 : vector<2x256xf32>
    %c224_i32 = arith.constant 224 : i32
    %458 = tpu.dynamic_rotate %433 by %c224_i32 dim 1 : vector<2x256xf32>, i32 -> vector<2x256xf32>
    %c5_43 = arith.constant 5 : index
    %c0_44 = arith.constant 0 : index
    %459 = vector.load %arg3[%c5_43, %c0_44] : memref<7x256xf32, #tpu.memory_space<vmem>>, vector<1x256xf32>
    %460 = vector.broadcast %459 : vector<1x256xf32> to vector<2x256xf32>
    %461 = arith.mulf %458, %460 : vector<2x256xf32>
    %462 = arith.addf %457, %461 : vector<2x256xf32>
    %c208_i32 = arith.constant 208 : i32
    %463 = tpu.dynamic_rotate %437 by %c208_i32 dim 1 : vector<2x256xf32>, i32 -> vector<2x256xf32>
    %c6_45 = arith.constant 6 : index
    %c0_46 = arith.constant 0 : index
    %464 = vector.load %arg3[%c6_45, %c0_46] : memref<7x256xf32, #tpu.memory_space<vmem>>, vector<1x256xf32>
    %465 = vector.broadcast %464 : vector<1x256xf32> to vector<2x256xf32>
    %466 = arith.mulf %463, %465 : vector<2x256xf32>
    %467 = arith.addf %462, %466 : vector<2x256xf32>
    %468 = arith.negf %467 : vector<2x256xf32>
    %469 = math.exp %468 : vector<2x256xf32>
    %cst_47 = arith.constant 1.000000e+00 : f32
    %470 = vector.broadcast %cst_47 : f32 to vector<2x256xf32>
    %471 = arith.addf %470, %469 : vector<2x256xf32>
    %472 = arith.divf %470, %471 : vector<2x256xf32>
    %473 = vector.shape_cast %472 : vector<2x256xf32> to vector<2x1x256xf32>
    %c0_48 = arith.constant 0 : index
    %c0_49 = arith.constant 0 : index
    %c0_50 = arith.constant 0 : index
    %474 = vector.load %arg4[%c0_48, %c0_49, %c0_50] : memref<2x4x256xf32, #tpu.memory_space<vmem>>, vector<2x4x256xf32>
    %475 = vector.broadcast %473 : vector<2x1x256xf32> to vector<2x4x256xf32>
    %476 = arith.mulf %474, %475 : vector<2x4x256xf32>
    %c0_51 = arith.constant 0 : index
    %c0_52 = arith.constant 0 : index
    %c0_53 = arith.constant 0 : index
    %477 = vector.load %arg5[%c0_51, %c0_52, %c0_53] : memref<2x4x256xf32, #tpu.memory_space<vmem>>, vector<2x4x256xf32>
    tpu.vector_store %arg5[%c0_51, %c0_52, %c0_53], %476 {strides = array<i32>} : memref<2x4x256xf32, #tpu.memory_space<vmem>>, vector<2x4x256xf32>,
    return
  }
  func.func @transform_0(%arg0: i32) -> i32 {
    %c0_i32 = arith.constant 0 : i32
    %c0_i32_0 = arith.constant 0 : i32
    return %c0_i32 : i32
  }
  func.func @transform_1(%arg0: i32) -> (i32, i32) {
    %c0_i32 = arith.constant 0 : i32
    %c0_i32_0 = arith.constant 0 : i32
    %c0_i32_1 = arith.constant 0 : i32
    return %c0_i32, %c0_i32_0 : i32, i32
  }
  func.func @transform_2(%arg0: i32) -> (i32, i32) {
    %c0_i32 = arith.constant 0 : i32
    %c0_i32_0 = arith.constant 0 : i32
    %c0_i32_1 = arith.constant 0 : i32
    return %c0_i32, %c0_i32_0 : i32, i32
  }
  func.func @transform_3(%arg0: i32) -> (i32, i32, i32) {
    %c0_i32 = arith.constant 0 : i32
    %c0_i32_0 = arith.constant 0 : i32
    %c0_i32_1 = arith.constant 0 : i32
    return %arg0, %c0_i32, %c0_i32_0 : i32, i32, i32
  }
  func.func @transform_4(%arg0: i32) -> (i32, i32, i32) {
    %c0_i32 = arith.constant 0 : i32
    %c0_i32_0 = arith.constant 0 : i32
    %c0_i32_1 = arith.constant 0 : i32
    return %arg0, %c0_i32, %c0_i32_0 : i32, i32, i32
  }
}

</mosaic_0001>

<llo_original>
// kernel: tpu_custom_call.1
$region0: #{tpu_custom_call.1}
  #allocation0 [shape = 'u32[]', space=smem, size = 0x4, offset = 0x4, fixed_abs, tag = 'smem constant byte address 0x4 - core index']
  #allocation1 [shape = 'u32[144,128]{1,0:T(1,128)}', space=vmem, size = 0x12000, scoped, tag = 'internal scratch']
  %s0 = inlined_call_operand.hbm [shape: f32[98], index: 0, kind: input, shape index: {}]
  %s1 = inlined_call_operand.hbm [shape: f32[7,256], index: 1, kind: input, shape index: {}]
  %s2 = inlined_call_operand.hbm [shape: f32[7,256], index: 2, kind: input, shape index: {}]
  %s3 = inlined_call_operand.hbm [shape: f32[2,4,256], index: 3, kind: input, shape index: {}]
  %s4 = inlined_call_operand.hbm [shape: f32[2,4,256], index: 4, kind: output, shape index: {}]
  %s5 = sld [smem:[#allocation0]]
  $region42: #{tpu_custom_call.1} parent=0
    _
  %s7 = ssub.s32 1, %s5
  %s8 = scalar_select 0, %s7, %s5
  $region1: #{tpu_custom_call.1} parent=0
    #allocation2 [shape = 'u8[512]{0}', space=smem, size = 0x200, scoped, tag = 'input window, operand 0, single buffered']
    #allocation3 [shape = 's32[1]{0}', space=sflag, size = 0x4, scoped, tag = 'scoped memory for tpu_custom_call.1']
    #allocation4 [shape = 's32[1]{0}', space=sflag, size = 0x4, scoped, tag = 'scoped memory for tpu_custom_call.1']
    #allocation5 [shape = 's32[1]{0}', space=sflag, size = 0x4, scoped, tag = 'scoped memory for tpu_custom_call.1']
    #allocation6 [shape = 'u8[8192]{0}', space=vmem, size = 0x2000, scoped, tag = 'input window, operand 1, single buffered']
    #allocation7 [shape = 'u8[8192]{0}', space=vmem, size = 0x2000, scoped, tag = 'input window, operand 2, single buffered']
    #allocation8 [shape = 's32[1]{0}', space=sflag, size = 0x4, scoped, tag = 'scoped memory for tpu_custom_call.1']
    #allocation9 [shape = 'u8[8192]{0}', space=vmem, size = 0x2000, scoped, tag = 'input window, operand 3, single buffered']
    #allocation10 [shape = 'u8[8192]{0}', space=vmem, size = 0x2000, scoped, tag = 'output window, operand 0, single buffered']
    %9 = vsyncpa [#allocation5], 0
    %10 = vsyncpa [#allocation3], 0
    %11 = vsyncpa [#allocation8], 0
    %12 = vsyncpa [#allocation4], 0
    // Predicated region
    $region2: #{tpu_custom_call.1} parent=1 // pred_check
      _
    $region3: #{tpu_custom_call.1} parent=1 // pred_check_branch
      %14 = sbr.rel (0) target = $region5
    $region4: #{tpu_custom_call.1} parent=1 // pred_region
      %s16 = ssub.s32 16, 16
      %17 = vsyncadd [#allocation5], %s16
      %20 = dma.hbm_to_smem %s0, 16, [#allocation2], [#allocation5]
    $region5: #{tpu_custom_call.1} parent=1 // pred_fallthru
      _
    // Predicated region
    $region6: #{tpu_custom_call.1} parent=1 // pred_check
      _
    $region7: #{tpu_custom_call.1} parent=1 // pred_check_branch
      %22 = sbr.rel (0) target = $region9
    $region8: #{tpu_custom_call.1} parent=1 // pred_region
      %s24 = ssub.s32 256, 256
      %25 = vsyncadd [#allocation3], %s24
      %s27 = sshll.u32 [#allocation6], 4
      %s28 = int_to_ptr.vmem [resolvable:$true] %s27
      %30 = dma.hbm_to_vmem [thread:$0]  %s1, 256, %s28, [#allocation3]
    $region9: #{tpu_custom_call.1} parent=1 // pred_fallthru
      _
    // Predicated region
    $region10: #{tpu_custom_call.1} parent=1 // pred_check
      _
    $region11: #{tpu_custom_call.1} parent=1 // pred_check_branch
      %32 = sbr.rel (0) target = $region13
    $region12: #{tpu_custom_call.1} parent=1 // pred_region
      %s34 = ssub.s32 256, 256
      %35 = vsyncadd [#allocation8], %s34
      %s37 = sshll.u32 [#allocation7], 4
      %s38 = int_to_ptr.vmem [resolvable:$true] %s37
      %40 = dma.hbm_to_vmem [thread:$0]  %s2, 256, %s38, [#allocation8]
    $region13: #{tpu_custom_call.1} parent=1 // pred_fallthru
      _
    // Predicated region
    $region14: #{tpu_custom_call.1} parent=1 // pred_check
      _
    $region15: #{tpu_custom_call.1} parent=1 // pred_check_branch
      %42 = sbr.rel (0) target = $region17
    $region16: #{tpu_custom_call.1} parent=1 // pred_region
      %s44 = ssub.s32 256, 256
      %45 = vsyncadd [#allocation8], %s44
      %s46 = sshll.u32 [#allocation9], 4
      %s47 = int_to_ptr.vmem [resolvable:$true] %s46
      %52 = dma.hbm_to_vmem [thread:$0]  %s3, 256, %s47, [#allocation8], 128, 128, 8
    $region17: #{tpu_custom_call.1} parent=1 // pred_fallthru
      _
    // Predicated region
    $region18: #{tpu_custom_call.1} parent=1 // pred_check
      _
    $region19: #{tpu_custom_call.1} parent=1 // pred_check_branch
      %54 = sbr.rel (0) target = $region21
    $region20: #{tpu_custom_call.1} parent=1 // pred_region
      %55 = dma.done [#allocation5], 16
    $region21: #{tpu_custom_call.1} parent=1 // pred_fallthru
      _
    // Predicated region
    $region22: #{tpu_custom_call.1} parent=1 // pred_check
      _
    $region23: #{tpu_custom_call.1} parent=1 // pred_check_branch
      %57 = sbr.rel (0) target = $region25
    $region24: #{tpu_custom_call.1} parent=1 // pred_region
      %58 = dma.done [#allocation3], 256
    $region25: #{tpu_custom_call.1} parent=1 // pred_fallthru
      _
    // Predicated region
    $region26: #{tpu_custom_call.1} parent=1 // pred_check
      _
    $region27: #{tpu_custom_call.1} parent=1 // pred_check_branch
      %60 = sbr.rel (0) target = $region29
    $region28: #{tpu_custom_call.1} parent=1 // pred_region
      %61 = dma.done [#allocation8], 256
    $region29: #{tpu_custom_call.1} parent=1 // pred_fallthru
      _
    // Predicated region
    $region30: #{tpu_custom_call.1} parent=1 // pred_check
      _
    $region31: #{tpu_custom_call.1} parent=1 // pred_check_branch
      %63 = sbr.rel (0) target = $region33
    $region32: #{tpu_custom_call.1} parent=1 // pred_region
      %64 = dma.done [#allocation8], 256
    $region33: #{tpu_custom_call.1} parent=1 // pred_fallthru
      _
    %65 = sfence
    %v66 = vld [vmem:[#allocation9] sm:$0xff]
    %v67 = vld [vmem:[#allocation9 + $0x8] sm:$0xff]
    %v70 = vcombine.high %v66, %v66
    %v71 = vcombine.high %v67, %v67
    %vm74 = vcmask 1043456
    %v75 = vsel %vm74, %v66, 0.0
    %v76 = vrot.slane %v75, 4
    %v77 = vadd.f32 %v75, %v76
    %v78 = vrot.slane %v77, 2
    %v79 = vadd.f32 %v77, %v78
    %v80 = vrot.slane %v79, 1
    %v81 = vadd.f32 %v79, %v80
    %v82 = vsel %vm74, %v70, 0.0
    %v83 = vrot.slane %v82, 4
    %v84 = vadd.f32 %v82, %v83
    %v85 = vrot.slane %v84, 2
    %v86 = vadd.f32 %v84, %v85
    %v87 = vrot.slane %v86, 1
    %v88 = vadd.f32 %v86, %v87
    %v89 = vsel %vm74, %v67, 0.0
    %v90 = vrot.slane %v89, 4
    %v91 = vadd.f32 %v89, %v90
    %v92 = vrot.slane %v91, 2
    %v93 = vadd.f32 %v91, %v92
    %v94 = vrot.slane %v93, 1
    %v95 = vadd.f32 %v93, %v94
    %v96 = vsel %vm74, %v71, 0.0
    %v97 = vrot.slane %v96, 4
    %v98 = vadd.f32 %v96, %v97
    %v99 = vrot.slane %v98, 2
    %v100 = vadd.f32 %v98, %v99
    %v101 = vrot.slane %v100, 1
    %v102 = vadd.f32 %v100, %v101
    %v103 = vsel %vm74, %v66, -inf
    %v104 = vrot.slane %v103, 4
    %v105 = vmax.f32 %v103, %v104
    %v106 = vrot.slane %v105, 2
    %v107 = vmax.f32 %v105, %v106
    %v108 = vrot.slane %v107, 1
    %v109 = vmax.f32 %v107, %v108
    %v110 = vsel %vm74, %v70, -inf
    %v111 = vrot.slane %v110, 4
    %v112 = vmax.f32 %v110, %v111
    %v113 = vrot.slane %v112, 2
    %v114 = vmax.f32 %v112, %v113
    %v115 = vrot.slane %v114, 1
    %v116 = vmax.f32 %v114, %v115
    %v117 = vsel %vm74, %v67, -inf
    %v118 = vrot.slane %v117, 4
    %v119 = vmax.f32 %v117, %v118
    %v120 = vrot.slane %v119, 2
    %v121 = vmax.f32 %v119, %v120
    %v122 = vrot.slane %v121, 1
    %v123 = vmax.f32 %v121, %v122
    %v124 = vsel %vm74, %v71, -inf
    %v125 = vrot.slane %v124, 4
    %v126 = vmax.f32 %v124, %v125
    %v127 = vrot.slane %v126, 2
    %v128 = vmax.f32 %v126, %v127
    %v129 = vrot.slane %v128, 1
    %v130 = vmax.f32 %v128, %v129
    %v131 = vmul.f32 %v81, 0.25
    %v132 = vmul.f32 %v88, 0.25
    %v133 = vmul.f32 %v95, 0.25
    %v134 = vmul.f32 %v102, 0.25
    %vm139 = vcmask 1041409
    %v140 = vsel %vm139, %v133, %v131
    %v141 = vsel %vm139, %v134, %v132
    %144 = vrot.lane.b32.xlu0 %v140, 3
    %v145 = vpop.permute.xlu0 %144
    %146 = vrot.lane.b32.xlu0 %v141, 3
    %v147 = vpop.permute.xlu0 %146
    %v148 = vlaneseq
    %v149 = vand.u32 %v148, 127
    %vm150 = vcmp.lt.s32.totalorder %v149, 3
    %v151 = vsel %vm150, %v145, %v147
    %v152 = vsel %vm150, %v147, %v145
    %v153 = vld [vmem:[#allocation6] ss:$8 sm:$0x3]
    %v155 = vlaneseq
    %v156 = vshrl.u32 %v155, 7
    %v157 = vsub.s32 0, %v156
    %v158 = vrot.slane %v153, %v157
    %v159 = vlaneseq
    %v160 = vshrl.u32 %v159, 7
    %v161 = vsub.s32 1, %v160
    %v162 = vrot.slane %v153, %v161
    %v165 = vmul.f32 %v152, %v158
    %v166 = vmul.f32 %v151, %v162
    %s167 = sld [smem:[#allocation2]]
    %v168 = vstv %s167
    %v169 = vmul.f32 %v168, %v165
    %v170 = vmul.f32 %v168, %v166
    %s171 = sld [smem:[#allocation2 + $0x7]]
    %v172 = vstv %s171
    %v173 = vmul.f32 %v172, %v165
    %v174 = vmul.f32 %v172, %v166
    %s175 = sld [smem:[#allocation2 + $0xe]]
    %v176 = vstv %s175
    %v177 = vmul.f32 %v176, %v165
    %v178 = vmul.f32 %v176, %v166
    %s179 = sld [smem:[#allocation2 + $0x15]]
    %v180 = vstv %s179
    %v181 = vmul.f32 %v180, %v165
    %v182 = vmul.f32 %v180, %v166
    %s183 = sld [smem:[#allocation2 + $0x1c]]
    %v184 = vstv %s183
    %v185 = vmul.f32 %v184, %v165
    %v186 = vmul.f32 %v184, %v166
    %s187 = sld [smem:[#allocation2 + $0x23]]
    %v188 = vstv %s187
    %v189 = vmul.f32 %v188, %v165
    %v190 = vmul.f32 %v188, %v166
    %s191 = sld [smem:[#allocation2 + $0x2a]]
    %v192 = vstv %s191
    %v193 = vmul.f32 %v192, %v165
    %v194 = vmul.f32 %v192, %v166
    %195 = vrot.lane.b32.xlu0 %v140, 2
    %v196 = vpop.permute.xlu0 %195
    %197 = vrot.lane.b32.xlu0 %v141, 2
    %v198 = vpop.permute.xlu0 %197
    %vm199 = vcmp.lt.s32.totalorder %v149, 2
    %v200 = vsel %vm199, %v196, %v198
    %v201 = vsel %vm199, %v198, %v196
    %s202 = scalar_lea.vmem [#allocation6], 1
    %v203 = vld [vmem:[%s202] ss:$8 sm:$0x3]
    %v205 = vlaneseq
    %v206 = vshrl.u32 %v205, 7
    %v207 = vsub.s32 0, %v206
    %v208 = vrot.slane %v203, %v207
    %v209 = vlaneseq
    %v210 = vshrl.u32 %v209, 7
    %v211 = vsub.s32 1, %v210
    %v212 = vrot.slane %v203, %v211
    %v215 = vmul.f32 %v201, %v208
    %v216 = vmul.f32 %v200, %v212
    %s217 = sld [smem:[#allocation2 + $0x1]]
    %v218 = vstv %s217
    %v219 = vmul.f32 %v218, %v215
    %v220 = vmul.f32 %v218, %v216
    %v221 = vadd.f32 %v169, %v219
    %v222 = vadd.f32 %v170, %v220
    %s223 = sld [smem:[#allocation2 + $0x8]]
    %v224 = vstv %s223
    %v225 = vmul.f32 %v224, %v215
    %v226 = vmul.f32 %v224, %v216
    %v227 = vadd.f32 %v173, %v225
    %v228 = vadd.f32 %v174, %v226
    %s229 = sld [smem:[#allocation2 + $0xf]]
    %v230 = vstv %s229
    %v231 = vmul.f32 %v230, %v215
    %v232 = vmul.f32 %v230, %v216
    %v233 = vadd.f32 %v177, %v231
    %v234 = vadd.f32 %v178, %v232
    %s235 = sld [smem:[#allocation2 + $0x16]]
    %v236 = vstv %s235
    %v237 = vmul.f32 %v236, %v215
    %v238 = vmul.f32 %v236, %v216
    %v239 = vadd.f32 %v181, %v237
    %v240 = vadd.f32 %v182, %v238
    %s241 = sld [smem:[#allocation2 + $0x1d]]
    %v242 = vstv %s241
    %v243 = vmul.f32 %v242, %v215
    %v244 = vmul.f32 %v242, %v216
    %v245 = vadd.f32 %v185, %v243
    %v246 = vadd.f32 %v186, %v244
    %s247 = sld [smem:[#allocation2 + $0x24]]
    %v248 = vstv %s247
    %v249 = vmul.f32 %v248, %v215
    %v250 = vmul.f32 %v248, %v216
    %v251 = vadd.f32 %v189, %v249
    %v252 = vadd.f32 %v190, %v250
    %s253 = sld [smem:[#allocation2 + $0x2b]]
    %v254 = vstv %s253
    %v255 = vmul.f32 %v254, %v215
    %v256 = vmul.f32 %v254, %v216
    %v257 = vadd.f32 %v193, %v255
    %v258 = vadd.f32 %v194, %v256
    %259 = vrot.lane.b32.xlu0 %v140, 1
    %v260 = vpop.permute.xlu0 %259
    %261 = vrot.lane.b32.xlu0 %v141, 1
    %v262 = vpop.permute.xlu0 %261
    %vm263 = vcmp.lt.s32.totalorder %v149, 1
    %v264 = vsel %vm263, %v260, %v262
    %v265 = vsel %vm263, %v262, %v260
    %s266 = scalar_lea.vmem [#allocation6], 2
    %v267 = vld [vmem:[%s266] ss:$8 sm:$0x3]
    %v269 = vlaneseq
    %v270 = vshrl.u32 %v269, 7
    %v271 = vsub.s32 0, %v270
    %v272 = vrot.slane %v267, %v271
    %v273 = vlaneseq
    %v274 = vshrl.u32 %v273, 7
    %v275 = vsub.s32 1, %v274
    %v276 = vrot.slane %v267, %v275
    %v279 = vmul.f32 %v265, %v272
    %v280 = vmul.f32 %v264, %v276
    %s281 = sld [smem:[#allocation2 + $0x2]]
    %v282 = vstv %s281
    %v283 = vmul.f32 %v282, %v279
    %v284 = vmul.f32 %v282, %v280
    %v285 = vadd.f32 %v221, %v283
    %v286 = vadd.f32 %v222, %v284
    %s287 = sld [smem:[#allocation2 + $0x9]]
    %v288 = vstv %s287
    %v289 = vmul.f32 %v288, %v279
    %v290 = vmul.f32 %v288, %v280
    %v291 = vadd.f32 %v227, %v289
    %v292 = vadd.f32 %v228, %v290
    %s293 = sld [smem:[#allocation2 + $0x10]]
    %v294 = vstv %s293
    %v295 = vmul.f32 %v294, %v279
    %v296 = vmul.f32 %v294, %v280
    %v297 = vadd.f32 %v233, %v295
    %v298 = vadd.f32 %v234, %v296
    %s299 = sld [smem:[#allocation2 + $0x17]]
    %v300 = vstv %s299
    %v301 = vmul.f32 %v300, %v279
    %v302 = vmul.f32 %v300, %v280
    %v303 = vadd.f32 %v239, %v301
    %v304 = vadd.f32 %v240, %v302
    %s305 = sld [smem:[#allocation2 + $0x1e]]
    %v306 = vstv %s305
    %v307 = vmul.f32 %v306, %v279
    %v308 = vmul.f32 %v306, %v280
    %v309 = vadd.f32 %v245, %v307
    %v310 = vadd.f32 %v246, %v308
    %s311 = sld [smem:[#allocation2 + $0x25]]
    %v312 = vstv %s311
    %v313 = vmul.f32 %v312, %v279
    %v314 = vmul.f32 %v312, %v280
    %v315 = vadd.f32 %v251, %v313
    %v316 = vadd.f32 %v252, %v314
    %s317 = sld [smem:[#allocation2 + $0x2c]]
    %v318 = vstv %s317
    %v319 = vmul.f32 %v318, %v279
    %v320 = vmul.f32 %v318, %v280
    %v321 = vadd.f32 %v257, %v319
    %v322 = vadd.f32 %v258, %v320
    %s323 = sld [smem:[#allocation2 + $0x3]]
    %v324 = vstv %s323
    %v325 = vmul.f32 %v324, %v131
    %v326 = vmul.f32 %v324, %v132
    %v327 = vmul.f32 %v324, %v133
    %v328 = vmul.f32 %v324, %v134
    %v333 = vsel %vm139, %v327, %v325
    %v334 = vsel %vm139, %v328, %v326
    %v337 = vadd.f32 %v285, %v333
    %v338 = vadd.f32 %v286, %v334
    %s339 = sld [smem:[#allocation2 + $0xa]]
    %v340 = vstv %s339
    %v341 = vmul.f32 %v340, %v131
    %v342 = vmul.f32 %v340, %v132
    %v343 = vmul.f32 %v340, %v133
    %v344 = vmul.f32 %v340, %v134
    %v349 = vsel %vm139, %v343, %v341
    %v350 = vsel %vm139, %v344, %v342
    %v353 = vadd.f32 %v291, %v349
    %v354 = vadd.f32 %v292, %v350
    %s355 = sld [smem:[#allocation2 + $0x11]]
    %v356 = vstv %s355
    %v357 = vmul.f32 %v356, %v131
    %v358 = vmul.f32 %v356, %v132
    %v359 = vmul.f32 %v356, %v133
    %v360 = vmul.f32 %v356, %v134
    %v365 = vsel %vm139, %v359, %v357
    %v366 = vsel %vm139, %v360, %v358
    %v369 = vadd.f32 %v297, %v365
    %v370 = vadd.f32 %v298, %v366
    %s371 = sld [smem:[#allocation2 + $0x18]]
    %v372 = vstv %s371
    %v373 = vmul.f32 %v372, %v131
    %v374 = vmul.f32 %v372, %v132
    %v375 = vmul.f32 %v372, %v133
    %v376 = vmul.f32 %v372, %v134
    %v381 = vsel %vm139, %v375, %v373
    %v382 = vsel %vm139, %v376, %v374
    %v385 = vadd.f32 %v303, %v381
    %v386 = vadd.f32 %v304, %v382
    %s387 = sld [smem:[#allocation2 + $0x1f]]
    %v388 = vstv %s387
    %v389 = vmul.f32 %v388, %v131
    %v390 = vmul.f32 %v388, %v132
    %v391 = vmul.f32 %v388, %v133
    %v392 = vmul.f32 %v388, %v134
    %v397 = vsel %vm139, %v391, %v389
    %v398 = vsel %vm139, %v392, %v390
    %v401 = vadd.f32 %v309, %v397
    %v402 = vadd.f32 %v310, %v398
    %s403 = sld [smem:[#allocation2 + $0x26]]
    %v404 = vstv %s403
    %v405 = vmul.f32 %v404, %v131
    %v406 = vmul.f32 %v404, %v132
    %v407 = vmul.f32 %v404, %v133
    %v408 = vmul.f32 %v404, %v134
    %v413 = vsel %vm139, %v407, %v405
    %v414 = vsel %vm139, %v408, %v406
    %v417 = vadd.f32 %v315, %v413
    %v418 = vadd.f32 %v316, %v414
    %s419 = sld [smem:[#allocation2 + $0x2d]]
    %v420 = vstv %s419
    %v421 = vmul.f32 %v420, %v131
    %v422 = vmul.f32 %v420, %v132
    %v423 = vmul.f32 %v420, %v133
    %v424 = vmul.f32 %v420, %v134
    %v429 = vsel %vm139, %v423, %v421
    %v430 = vsel %vm139, %v424, %v422
    %v433 = vadd.f32 %v321, %v429
    %v434 = vadd.f32 %v322, %v430
    %435 = vrot.lane.b32.xlu0 %v140, 127
    %v436 = vpop.permute.xlu0 %435
    %437 = vrot.lane.b32.xlu0 %v141, 127
    %v438 = vpop.permute.xlu0 %437
    %vm439 = vcmp.lt.s32.totalorder %v149, 127
    %v440 = vsel %vm439, %v436, %v438
    %v441 = vsel %vm439, %v438, %v436
    %s442 = scalar_lea.vmem [#allocation6], 4
    %v443 = vld [vmem:[%s442] ss:$8 sm:$0x3]
    %v445 = vlaneseq
    %v446 = vshrl.u32 %v445, 7
    %v447 = vsub.s32 0, %v446
    %v448 = vrot.slane %v443, %v447
    %v449 = vlaneseq
    %v450 = vshrl.u32 %v449, 7
    %v451 = vsub.s32 1, %v450
    %v452 = vrot.slane %v443, %v451
    %v455 = vmul.f32 %v440, %v448
    %v456 = vmul.f32 %v441, %v452
    %s457 = sld [smem:[#allocation2 + $0x4]]
    %v458 = vstv %s457
    %v459 = vmul.f32 %v458, %v455
    %v460 = vmul.f32 %v458, %v456
    %v461 = vadd.f32 %v337, %v459
    %v462 = vadd.f32 %v338, %v460
    %s463 = sld [smem:[#allocation2 + $0xb]]
    %v464 = vstv %s463
    %v465 = vmul.f32 %v464, %v455
    %v466 = vmul.f32 %v464, %v456
    %v467 = vadd.f32 %v353, %v465
    %v468 = vadd.f32 %v354, %v466
    %s469 = sld [smem:[#allocation2 + $0x12]]
    %v470 = vstv %s469
    %v471 = vmul.f32 %v470, %v455
    %v472 = vmul.f32 %v470, %v456
    %v473 = vadd.f32 %v369, %v471
    %v474 = vadd.f32 %v370, %v472
    %s475 = sld [smem:[#allocation2 + $0x19]]
    %v476 = vstv %s475
    %v477 = vmul.f32 %v476, %v455
    %v478 = vmul.f32 %v476, %v456
    %v479 = vadd.f32 %v385, %v477
    %v480 = vadd.f32 %v386, %v478
    %s481 = sld [smem:[#allocation2 + $0x20]]
    %v482 = vstv %s481
    %v483 = vmul.f32 %v482, %v455
    %v484 = vmul.f32 %v482, %v456
    %v485 = vadd.f32 %v401, %v483
    %v486 = vadd.f32 %v402, %v484
    %s487 = sld [smem:[#allocation2 + $0x27]]
    %v488 = vstv %s487
    %v489 = vmul.f32 %v488, %v455
    %v490 = vmul.f32 %v488, %v456
    %v491 = vadd.f32 %v417, %v489
    %v492 = vadd.f32 %v418, %v490
    %s493 = sld [smem:[#allocation2 + $0x2e]]
    %v494 = vstv %s493
    %v495 = vmul.f32 %v494, %v455
    %v496 = vmul.f32 %v494, %v456
    %v497 = vadd.f32 %v433, %v495
    %v498 = vadd.f32 %v434, %v496
    %499 = vrot.lane.b32.xlu0 %v140, 126
    %v500 = vpop.permute.xlu0 %499
    %501 = vrot.lane.b32.xlu0 %v141, 126
    %v502 = vpop.permute.xlu0 %501
    %vm503 = vcmp.lt.s32.totalorder %v149, 126
    %v504 = vsel %vm503, %v500, %v502
    %v505 = vsel %vm503, %v502, %v500
    %s506 = scalar_lea.vmem [#allocation6], 5
    %v507 = vld [vmem:[%s506] ss:$8 sm:$0x3]
    %v509 = vlaneseq
    %v510 = vshrl.u32 %v509, 7
    %v511 = vsub.s32 0, %v510
    %v512 = vrot.slane %v507, %v511
    %v513 = vlaneseq
    %v514 = vshrl.u32 %v513, 7
    %v515 = vsub.s32 1, %v514
    %v516 = vrot.slane %v507, %v515
    %v519 = vmul.f32 %v504, %v512
    %v520 = vmul.f32 %v505, %v516
    %s521 = sld [smem:[#allocation2 + $0x5]]
    %v522 = vstv %s521
    %v523 = vmul.f32 %v522, %v519
    %v524 = vmul.f32 %v522, %v520
    %v525 = vadd.f32 %v461, %v523
    %v526 = vadd.f32 %v462, %v524
    %s527 = sld [smem:[#allocation2 + $0xc]]
    %v528 = vstv %s527
    %v529 = vmul.f32 %v528, %v519
    %v530 = vmul.f32 %v528, %v520
    %v531 = vadd.f32 %v467, %v529
    %v532 = vadd.f32 %v468, %v530
    %s533 = sld [smem:[#allocation2 + $0x13]]
    %v534 = vstv %s533
    %v535 = vmul.f32 %v534, %v519
    %v536 = vmul.f32 %v534, %v520
    %v537 = vadd.f32 %v473, %v535
    %v538 = vadd.f32 %v474, %v536
    %s539 = sld [smem:[#allocation2 + $0x1a]]
    %v540 = vstv %s539
    %v541 = vmul.f32 %v540, %v519
    %v542 = vmul.f32 %v540, %v520
    %v543 = vadd.f32 %v479, %v541
    %v544 = vadd.f32 %v480, %v542
    %s545 = sld [smem:[#allocation2 + $0x21]]
    %v546 = vstv %s545
    %v547 = vmul.f32 %v546, %v519
    %v548 = vmul.f32 %v546, %v520
    %v549 = vadd.f32 %v485, %v547
    %v550 = vadd.f32 %v486, %v548
    %s551 = sld [smem:[#allocation2 + $0x28]]
    %v552 = vstv %s551
    %v553 = vmul.f32 %v552, %v519
    %v554 = vmul.f32 %v552, %v520
    %v555 = vadd.f32 %v491, %v553
    %v556 = vadd.f32 %v492, %v554
    %s557 = sld [smem:[#allocation2 + $0x2f]]
    %v558 = vstv %s557
    %v559 = vmul.f32 %v558, %v519
    %v560 = vmul.f32 %v558, %v520
    %v561 = vadd.f32 %v497, %v559
    %v562 = vadd.f32 %v498, %v560
    %563 = vrot.lane.b32.xlu0 %v140, 125
    %v564 = vpop.permute.xlu0 %563
    %565 = vrot.lane.b32.xlu0 %v141, 125
    %v566 = vpop.permute.xlu0 %565
    %vm567 = vcmp.lt.s32.totalorder %v149, 125
    %v568 = vsel %vm567, %v564, %v566
    %v569 = vsel %vm567, %v566, %v564
    %s570 = scalar_lea.vmem [#allocation6], 6
    %v571 = vld [vmem:[%s570] ss:$8 sm:$0x3]
    %v573 = vlaneseq
    %v574 = vshrl.u32 %v573, 7
    %v575 = vsub.s32 0, %v574
    %v576 = vrot.slane %v571, %v575
    %v577 = vlaneseq
    %v578 = vshrl.u32 %v577, 7
    %v579 = vsub.s32 1, %v578
    %v580 = vrot.slane %v571, %v579
    %v583 = vmul.f32 %v568, %v576
    %v584 = vmul.f32 %v569, %v580
    %s585 = sld [smem:[#allocation2 + $0x6]]
    %v586 = vstv %s585
    %v587 = vmul.f32 %v586, %v583
    %v588 = vmul.f32 %v586, %v584
    %v589 = vadd.f32 %v525, %v587
    %v590 = vadd.f32 %v526, %v588
    %s591 = sld [smem:[#allocation2 + $0xd]]
    %v592 = vstv %s591
    %v593 = vmul.f32 %v592, %v583
    %v594 = vmul.f32 %v592, %v584
    %v595 = vadd.f32 %v531, %v593
    %v596 = vadd.f32 %v532, %v594
    %s597 = sld [smem:[#allocation2 + $0x14]]
    %v598 = vstv %s597
    %v599 = vmul.f32 %v598, %v583
    %v600 = vmul.f32 %v598, %v584
    %v601 = vadd.f32 %v537, %v599
    %v602 = vadd.f32 %v538, %v600
    %s603 = sld [smem:[#allocation2 + $0x1b]]
    %v604 = vstv %s603
    %v605 = vmul.f32 %v604, %v583
    %v606 = vmul.f32 %v604, %v584
    %v607 = vadd.f32 %v543, %v605
    %v608 = vadd.f32 %v544, %v606
    %s609 = sld [smem:[#allocation2 + $0x22]]
    %v610 = vstv %s609
    %v611 = vmul.f32 %v610, %v583
    %v612 = vmul.f32 %v610, %v584
    %v613 = vadd.f32 %v549, %v611
    %v614 = vadd.f32 %v550, %v612
    %s615 = sld [smem:[#allocation2 + $0x29]]
    %v616 = vstv %s615
    %v617 = vmul.f32 %v616, %v583
    %v618 = vmul.f32 %v616, %v584
    %v619 = vadd.f32 %v555, %v617
    %v620 = vadd.f32 %v556, %v618
    %s621 = sld [smem:[#allocation2 + $0x30]]
    %v622 = vstv %s621
    %v623 = vmul.f32 %v622, %v583
    %v624 = vmul.f32 %v622, %v584
    %v625 = vadd.f32 %v561, %v623
    %v626 = vadd.f32 %v562, %v624
    %v631 = vsel %vm139, %v123, %v109
    %v632 = vsel %vm139, %v130, %v116
    %635 = vrot.lane.b32.xlu0 %v631, 3
    %v636 = vpop.permute.xlu0 %635
    %637 = vrot.lane.b32.xlu0 %v632, 3
    %v638 = vpop.permute.xlu0 %637
    %v639 = vsel %vm150, %v636, %v638
    %v640 = vsel %vm150, %v638, %v636
    %v641 = vmul.f32 %v640, %v158
    %v642 = vmul.f32 %v639, %v162
    %s643 = sld [smem:[#allocation2 + $0x31]]
    %v644 = vstv %s643
    %v645 = vmul.f32 %v644, %v641
    %v646 = vmul.f32 %v644, %v642
    %v647 = vadd.f32 %v589, %v645
    %v648 = vadd.f32 %v590, %v646
    %s649 = sld [smem:[#allocation2 + $0x38]]
    %v650 = vstv %s649
    %v651 = vmul.f32 %v650, %v641
    %v652 = vmul.f32 %v650, %v642
    %v653 = vadd.f32 %v595, %v651
    %v654 = vadd.f32 %v596, %v652
    %s655 = sld [smem:[#allocation2 + $0x3f]]
    %v656 = vstv %s655
    %v657 = vmul.f32 %v656, %v641
    %v658 = vmul.f32 %v656, %v642
    %v659 = vadd.f32 %v601, %v657
    %v660 = vadd.f32 %v602, %v658
    %s661 = sld [smem:[#allocation2 + $0x46]]
    %v662 = vstv %s661
    %v663 = vmul.f32 %v662, %v641
    %v664 = vmul.f32 %v662, %v642
    %v665 = vadd.f32 %v607, %v663
    %v666 = vadd.f32 %v608, %v664
    %s667 = sld [smem:[#allocation2 + $0x4d]]
    %v668 = vstv %s667
    %v669 = vmul.f32 %v668, %v641
    %v670 = vmul.f32 %v668, %v642
    %v671 = vadd.f32 %v613, %v669
    %v672 = vadd.f32 %v614, %v670
    %s673 = sld [smem:[#allocation2 + $0x54]]
    %v674 = vstv %s673
    %v675 = vmul.f32 %v674, %v641
    %v676 = vmul.f32 %v674, %v642
    %v677 = vadd.f32 %v619, %v675
    %v678 = vadd.f32 %v620, %v676
    %s679 = sld [smem:[#allocation2 + $0x5b]]
    %v680 = vstv %s679
    %v681 = vmul.f32 %v680, %v641
    %v682 = vmul.f32 %v680, %v642
    %v683 = vadd.f32 %v625, %v681
    %v684 = vadd.f32 %v626, %v682
    %685 = vrot.lane.b32.xlu0 %v631, 2
    %v686 = vpop.permute.xlu0 %685
    %687 = vrot.lane.b32.xlu0 %v632, 2
    %v688 = vpop.permute.xlu0 %687
    %v689 = vsel %vm199, %v686, %v688
    %v690 = vsel %vm199, %v688, %v686
    %v691 = vmul.f32 %v690, %v208
    %v692 = vmul.f32 %v689, %v212
    %s693 = sld [smem:[#allocation2 + $0x32]]
    %v694 = vstv %s693
    %v695 = vmul.f32 %v694, %v691
    %v696 = vmul.f32 %v694, %v692
    %v697 = vadd.f32 %v647, %v695
    %v698 = vadd.f32 %v648, %v696
    %s699 = sld [smem:[#allocation2 + $0x39]]
    %v700 = vstv %s699
    %v701 = vmul.f32 %v700, %v691
    %v702 = vmul.f32 %v700, %v692
    %v703 = vadd.f32 %v653, %v701
    %v704 = vadd.f32 %v654, %v702
    %s705 = sld [smem:[#allocation2 + $0x40]]
    %v706 = vstv %s705
    %v707 = vmul.f32 %v706, %v691
    %v708 = vmul.f32 %v706, %v692
    %v709 = vadd.f32 %v659, %v707
    %v710 = vadd.f32 %v660, %v708
    %s711 = sld [smem:[#allocation2 + $0x47]]
    %v712 = vstv %s711
    %v713 = vmul.f32 %v712, %v691
    %v714 = vmul.f32 %v712, %v692
    %v715 = vadd.f32 %v665, %v713
    %v716 = vadd.f32 %v666, %v714
    %s717 = sld [smem:[#allocation2 + $0x4e]]
    %v718 = vstv %s717
    %v719 = vmul.f32 %v718, %v691
    %v720 = vmul.f32 %v718, %v692
    %v721 = vadd.f32 %v671, %v719
    %v722 = vadd.f32 %v672, %v720
    %s723 = sld [smem:[#allocation2 + $0x55]]
    %v724 = vstv %s723
    %v725 = vmul.f32 %v724, %v691
    %v726 = vmul.f32 %v724, %v692
    %v727 = vadd.f32 %v677, %v725
    %v728 = vadd.f32 %v678, %v726
    %s729 = sld [smem:[#allocation2 + $0x5c]]
    %v730 = vstv %s729
    %v731 = vmul.f32 %v730, %v691
    %v732 = vmul.f32 %v730, %v692
    %v733 = vadd.f32 %v683, %v731
    %v734 = vadd.f32 %v684, %v732
    %735 = vrot.lane.b32.xlu0 %v631, 1
    %v736 = vpop.permute.xlu0 %735
    %737 = vrot.lane.b32.xlu0 %v632, 1
    %v738 = vpop.permute.xlu0 %737
    %v739 = vsel %vm263, %v736, %v738
    %v740 = vsel %vm263, %v738, %v736
    %v741 = vmul.f32 %v740, %v272
    %v742 = vmul.f32 %v739, %v276
    %s743 = sld [smem:[#allocation2 + $0x33]]
    %v744 = vstv %s743
    %v745 = vmul.f32 %v744, %v741
    %v746 = vmul.f32 %v744, %v742
    %v747 = vadd.f32 %v697, %v745
    %v748 = vadd.f32 %v698, %v746
    %s749 = sld [smem:[#allocation2 + $0x3a]]
    %v750 = vstv %s749
    %v751 = vmul.f32 %v750, %v741
    %v752 = vmul.f32 %v750, %v742
    %v753 = vadd.f32 %v703, %v751
    %v754 = vadd.f32 %v704, %v752
    %s755 = sld [smem:[#allocation2 + $0x41]]
    %v756 = vstv %s755
    %v757 = vmul.f32 %v756, %v741
    %v758 = vmul.f32 %v756, %v742
    %v759 = vadd.f32 %v709, %v757
    %v760 = vadd.f32 %v710, %v758
    %s761 = sld [smem:[#allocation2 + $0x48]]
    %v762 = vstv %s761
    %v763 = vmul.f32 %v762, %v741
    %v764 = vmul.f32 %v762, %v742
    %v765 = vadd.f32 %v715, %v763
    %v766 = vadd.f32 %v716, %v764
    %s767 = sld [smem:[#allocation2 + $0x4f]]
    %v768 = vstv %s767
    %v769 = vmul.f32 %v768, %v741
    %v770 = vmul.f32 %v768, %v742
    %v771 = vadd.f32 %v721, %v769
    %v772 = vadd.f32 %v722, %v770
    %s773 = sld [smem:[#allocation2 + $0x56]]
    %v774 = vstv %s773
    %v775 = vmul.f32 %v774, %v741
    %v776 = vmul.f32 %v774, %v742
    %v777 = vadd.f32 %v727, %v775
    %v778 = vadd.f32 %v728, %v776
    %s779 = sld [smem:[#allocation2 + $0x5d]]
    %v780 = vstv %s779
    %v781 = vmul.f32 %v780, %v741
    %v782 = vmul.f32 %v780, %v742
    %v783 = vadd.f32 %v733, %v781
    %v784 = vadd.f32 %v734, %v782
    %s785 = sld [smem:[#allocation2 + $0x34]]
    %v786 = vstv %s785
    %v787 = vmul.f32 %v786, %v109
    %v788 = vmul.f32 %v786, %v116
    %v789 = vmul.f32 %v786, %v123
    %v790 = vmul.f32 %v786, %v130
    %v795 = vsel %vm139, %v789, %v787
    %v796 = vsel %vm139, %v790, %v788
    %v799 = vadd.f32 %v747, %v795
    %v800 = vadd.f32 %v748, %v796
    %s801 = sld [smem:[#allocation2 + $0x3b]]
    %v802 = vstv %s801
    %v803 = vmul.f32 %v802, %v109
    %v804 = vmul.f32 %v802, %v116
    %v805 = vmul.f32 %v802, %v123
    %v806 = vmul.f32 %v802, %v130
    %v811 = vsel %vm139, %v805, %v803
    %v812 = vsel %vm139, %v806, %v804
    %v815 = vadd.f32 %v753, %v811
    %v816 = vadd.f32 %v754, %v812
    %s817 = sld [smem:[#allocation2 + $0x42]]
    %v818 = vstv %s817
    %v819 = vmul.f32 %v818, %v109
    %v820 = vmul.f32 %v818, %v116
    %v821 = vmul.f32 %v818, %v123
    %v822 = vmul.f32 %v818, %v130
    %v827 = vsel %vm139, %v821, %v819
    %v828 = vsel %vm139, %v822, %v820
    %v831 = vadd.f32 %v759, %v827
    %v832 = vadd.f32 %v760, %v828
    %s833 = sld [smem:[#allocation2 + $0x49]]
    %v834 = vstv %s833
    %v835 = vmul.f32 %v834, %v109
    %v836 = vmul.f32 %v834, %v116
    %v837 = vmul.f32 %v834, %v123
    %v838 = vmul.f32 %v834, %v130
    %v843 = vsel %vm139, %v837, %v835
    %v844 = vsel %vm139, %v838, %v836
    %v847 = vadd.f32 %v765, %v843
    %v848 = vadd.f32 %v766, %v844
    %s849 = sld [smem:[#allocation2 + $0x50]]
    %v850 = vstv %s849
    %v851 = vmul.f32 %v850, %v109
    %v852 = vmul.f32 %v850, %v116
    %v853 = vmul.f32 %v850, %v123
    %v854 = vmul.f32 %v850, %v130
    %v859 = vsel %vm139, %v853, %v851
    %v860 = vsel %vm139, %v854, %v852
    %v863 = vadd.f32 %v771, %v859
    %v864 = vadd.f32 %v772, %v860
    %s865 = sld [smem:[#allocation2 + $0x57]]
    %v866 = vstv %s865
    %v867 = vmul.f32 %v866, %v109
    %v868 = vmul.f32 %v866, %v116
    %v869 = vmul.f32 %v866, %v123
    %v870 = vmul.f32 %v866, %v130
    %v875 = vsel %vm139, %v869, %v867
    %v876 = vsel %vm139, %v870, %v868
    %v879 = vadd.f32 %v777, %v875
    %v880 = vadd.f32 %v778, %v876
    %s881 = sld [smem:[#allocation2 + $0x5e]]
    %v882 = vstv %s881
    %v883 = vmul.f32 %v882, %v109
    %v884 = vmul.f32 %v882, %v116
    %v885 = vmul.f32 %v882, %v123
    %v886 = vmul.f32 %v882, %v130
    %v891 = vsel %vm139, %v885, %v883
    %v892 = vsel %vm139, %v886, %v884
    %v895 = vadd.f32 %v783, %v891
    %v896 = vadd.f32 %v784, %v892
    %897 = vrot.lane.b32.xlu0 %v631, 127
    %v898 = vpop.permute.xlu0 %897
    %899 = vrot.lane.b32.xlu0 %v632, 127
    %v900 = vpop.permute.xlu0 %899
    %v901 = vsel %vm439, %v898, %v900
    %v902 = vsel %vm439, %v900, %v898
    %v903 = vmul.f32 %v901, %v448
    %v904 = vmul.f32 %v902, %v452
    %s905 = sld [smem:[#allocation2 + $0x35]]
    %v906 = vstv %s905
    %v907 = vmul.f32 %v906, %v903
    %v908 = vmul.f32 %v906, %v904
    %v909 = vadd.f32 %v799, %v907
    %v910 = vadd.f32 %v800, %v908
    %s911 = sld [smem:[#allocation2 + $0x3c]]
    %v912 = vstv %s911
    %v913 = vmul.f32 %v912, %v903
    %v914 = vmul.f32 %v912, %v904
    %v915 = vadd.f32 %v815, %v913
    %v916 = vadd.f32 %v816, %v914
    %s917 = sld [smem:[#allocation2 + $0x43]]
    %v918 = vstv %s917
    %v919 = vmul.f32 %v918, %v903
    %v920 = vmul.f32 %v918, %v904
    %v921 = vadd.f32 %v831, %v919
    %v922 = vadd.f32 %v832, %v920
    %s923 = sld [smem:[#allocation2 + $0x4a]]
    %v924 = vstv %s923
    %v925 = vmul.f32 %v924, %v903
    %v926 = vmul.f32 %v924, %v904
    %v927 = vadd.f32 %v847, %v925
    %v928 = vadd.f32 %v848, %v926
    %s929 = sld [smem:[#allocation2 + $0x51]]
    %v930 = vstv %s929
    %v931 = vmul.f32 %v930, %v903
    %v932 = vmul.f32 %v930, %v904
    %v933 = vadd.f32 %v863, %v931
    %v934 = vadd.f32 %v864, %v932
    %s935 = sld [smem:[#allocation2 + $0x58]]
    %v936 = vstv %s935
    %v937 = vmul.f32 %v936, %v903
    %v938 = vmul.f32 %v936, %v904
    %v939 = vadd.f32 %v879, %v937
    %v940 = vadd.f32 %v880, %v938
    %s941 = sld [smem:[#allocation2 + $0x5f]]
    %v942 = vstv %s941
    %v943 = vmul.f32 %v942, %v903
    %v944 = vmul.f32 %v942, %v904
    %v945 = vadd.f32 %v895, %v943
    %v946 = vadd.f32 %v896, %v944
    %947 = vrot.lane.b32.xlu0 %v631, 126
    %v948 = vpop.permute.xlu0 %947
    %949 = vrot.lane.b32.xlu0 %v632, 126
    %v950 = vpop.permute.xlu0 %949
    %v951 = vsel %vm503, %v948, %v950
    %v952 = vsel %vm503, %v950, %v948
    %v953 = vmul.f32 %v951, %v512
    %v954 = vmul.f32 %v952, %v516
    %s955 = sld [smem:[#allocation2 + $0x36]]
    %v956 = vstv %s955
    %v957 = vmul.f32 %v956, %v953
    %v958 = vmul.f32 %v956, %v954
    %v959 = vadd.f32 %v909, %v957
    %v960 = vadd.f32 %v910, %v958
    %s961 = sld [smem:[#allocation2 + $0x3d]]
    %v962 = vstv %s961
    %v963 = vmul.f32 %v962, %v953
    %v964 = vmul.f32 %v962, %v954
    %v965 = vadd.f32 %v915, %v963
    %v966 = vadd.f32 %v916, %v964
    %s967 = sld [smem:[#allocation2 + $0x44]]
    %v968 = vstv %s967
    %v969 = vmul.f32 %v968, %v953
    %v970 = vmul.f32 %v968, %v954
    %v971 = vadd.f32 %v921, %v969
    %v972 = vadd.f32 %v922, %v970
    %s973 = sld [smem:[#allocation2 + $0x4b]]
    %v974 = vstv %s973
    %v975 = vmul.f32 %v974, %v953
    %v976 = vmul.f32 %v974, %v954
    %v977 = vadd.f32 %v927, %v975
    %v978 = vadd.f32 %v928, %v976
    %s979 = sld [smem:[#allocation2 + $0x52]]
    %v980 = vstv %s979
    %v981 = vmul.f32 %v980, %v953
    %v982 = vmul.f32 %v980, %v954
    %v983 = vadd.f32 %v933, %v981
    %v984 = vadd.f32 %v934, %v982
    %s985 = sld [smem:[#allocation2 + $0x59]]
    %v986 = vstv %s985
    %v987 = vmul.f32 %v986, %v953
    %v988 = vmul.f32 %v986, %v954
    %v989 = vadd.f32 %v939, %v987
    %v990 = vadd.f32 %v940, %v988
    %s991 = sld [smem:[#allocation2 + $0x60]]
    %v992 = vstv %s991
    %v993 = vmul.f32 %v992, %v953
    %v994 = vmul.f32 %v992, %v954
    %v995 = vadd.f32 %v945, %v993
    %v996 = vadd.f32 %v946, %v994
    %997 = vrot.lane.b32.xlu0 %v631, 125
    %v998 = vpop.permute.xlu0 %997
    %999 = vrot.lane.b32.xlu0 %v632, 125
    %v1000 = vpop.permute.xlu0 %999
    %v1001 = vsel %vm567, %v998, %v1000
    %v1002 = vsel %vm567, %v1000, %v998
    %v1003 = vmul.f32 %v1001, %v576
    %v1004 = vmul.f32 %v1002, %v580
    %s1005 = sld [smem:[#allocation2 + $0x37]]
    %v1006 = vstv %s1005
    %v1007 = vmul.f32 %v1006, %v1003
    %v1008 = vmul.f32 %v1006, %v1004
    %v1009 = vadd.f32 %v959, %v1007
    %v1010 = vadd.f32 %v960, %v1008
    %s1011 = sld [smem:[#allocation2 + $0x3e]]
    %v1012 = vstv %s1011
    %v1013 = vmul.f32 %v1012, %v1003
    %v1014 = vmul.f32 %v1012, %v1004
    %v1015 = vadd.f32 %v965, %v1013
    %v1016 = vadd.f32 %v966, %v1014
    %s1017 = sld [smem:[#allocation2 + $0x45]]
    %v1018 = vstv %s1017
    %v1019 = vmul.f32 %v1018, %v1003
    %v1020 = vmul.f32 %v1018, %v1004
    %v1021 = vadd.f32 %v971, %v1019
    %v1022 = vadd.f32 %v972, %v1020
    %s1023 = sld [smem:[#allocation2 + $0x4c]]
    %v1024 = vstv %s1023
    %v1025 = vmul.f32 %v1024, %v1003
    %v1026 = vmul.f32 %v1024, %v1004
    %v1027 = vadd.f32 %v977, %v1025
    %v1028 = vadd.f32 %v978, %v1026
    %s1029 = sld [smem:[#allocation2 + $0x53]]
    %v1030 = vstv %s1029
    %v1031 = vmul.f32 %v1030, %v1003
    %v1032 = vmul.f32 %v1030, %v1004
    %v1033 = vadd.f32 %v983, %v1031
    %v1034 = vadd.f32 %v984, %v1032
    %s1035 = sld [smem:[#allocation2 + $0x5a]]
    %v1036 = vstv %s1035
    %v1037 = vmul.f32 %v1036, %v1003
    %v1038 = vmul.f32 %v1036, %v1004
    %v1039 = vadd.f32 %v989, %v1037
    %v1040 = vadd.f32 %v990, %v1038
    %s1041 = sld [smem:[#allocation2 + $0x61]]
    %v1042 = vstv %s1041
    %v1043 = vmul.f32 %v1042, %v1003
    %v1044 = vmul.f32 %v1042, %v1004
    %v1045 = vadd.f32 %v995, %v1043
    %v1046 = vadd.f32 %v996, %v1044
    %1047 = vrot.lane.b32.xlu0 %v1009, 48
    %v1048 = vpop.permute.xlu0 %1047
    %1049 = vrot.lane.b32.xlu0 %v1010, 48
    %v1050 = vpop.permute.xlu0 %1049
    %vm1051 = vcmp.lt.s32.totalorder %v149, 48
    %v1052 = vsel %vm1051, %v1048, %v1050
    %v1053 = vsel %vm1051, %v1050, %v1048
    %v1054 = vld [vmem:[#allocation7] ss:$8 sm:$0x3]
    %v1056 = vlaneseq
    %v1057 = vshrl.u32 %v1056, 7
    %v1058 = vsub.s32 0, %v1057
    %v1059 = vrot.slane %v1054, %v1058
    %v1060 = vlaneseq
    %v1061 = vshrl.u32 %v1060, 7
    %v1062 = vsub.s32 1, %v1061
    %v1063 = vrot.slane %v1054, %v1062
    %v1066 = vmul.f32 %v1053, %v1059
    %v1067 = vmul.f32 %v1052, %v1063
    %1068 = vrot.lane.b32.xlu0 %v1015, 32
    %v1069 = vpop.permute.xlu0 %1068
    %1070 = vrot.lane.b32.xlu0 %v1016, 32
    %v1071 = vpop.permute.xlu0 %1070
    %vm1072 = vcmp.lt.s32.totalorder %v149, 32
    %v1073 = vsel %vm1072, %v1069, %v1071
    %v1074 = vsel %vm1072, %v1071, %v1069
    %s1075 = scalar_lea.vmem [#allocation7], 1
    %v1076 = vld [vmem:[%s1075] ss:$8 sm:$0x3]
    %v1078 = vlaneseq
    %v1079 = vshrl.u32 %v1078, 7
    %v1080 = vsub.s32 0, %v1079
    %v1081 = vrot.slane %v1076, %v1080
    %v1082 = vlaneseq
    %v1083 = vshrl.u32 %v1082, 7
    %v1084 = vsub.s32 1, %v1083
    %v1085 = vrot.slane %v1076, %v1084
    %v1088 = vmul.f32 %v1074, %v1081
    %v1089 = vmul.f32 %v1073, %v1085
    %v1090 = vadd.f32 %v1066, %v1088
    %v1091 = vadd.f32 %v1067, %v1089
    %1092 = vrot.lane.b32.xlu0 %v1021, 16
    %v1093 = vpop.permute.xlu0 %1092
    %1094 = vrot.lane.b32.xlu0 %v1022, 16
    %v1095 = vpop.permute.xlu0 %1094
    %vm1096 = vcmp.lt.s32.totalorder %v149, 16
    %v1097 = vsel %vm1096, %v1093, %v1095
    %v1098 = vsel %vm1096, %v1095, %v1093
    %s1099 = scalar_lea.vmem [#allocation7], 2
    %v1100 = vld [vmem:[%s1099] ss:$8 sm:$0x3]
    %v1102 = vlaneseq
    %v1103 = vshrl.u32 %v1102, 7
    %v1104 = vsub.s32 0, %v1103
    %v1105 = vrot.slane %v1100, %v1104
    %v1106 = vlaneseq
    %v1107 = vshrl.u32 %v1106, 7
    %v1108 = vsub.s32 1, %v1107
    %v1109 = vrot.slane %v1100, %v1108
    %v1112 = vmul.f32 %v1098, %v1105
    %v1113 = vmul.f32 %v1097, %v1109
    %v1114 = vadd.f32 %v1090, %v1112
    %v1115 = vadd.f32 %v1091, %v1113
    %v1116 = vadd.f32 %v1114, %v1027
    %v1117 = vadd.f32 %v1115, %v1028
    %1118 = vrot.lane.b32.xlu0 %v1033, 112
    %v1119 = vpop.permute.xlu0 %1118
    %1120 = vrot.lane.b32.xlu0 %v1034, 112
    %v1121 = vpop.permute.xlu0 %1120
    %vm1122 = vcmp.lt.s32.totalorder %v149, 112
    %v1123 = vsel %vm1122, %v1119, %v1121
    %v1124 = vsel %vm1122, %v1121, %v1119
    %s1125 = scalar_lea.vmem [#allocation7], 4
    %v1126 = vld [vmem:[%s1125] ss:$8 sm:$0x3]
    %v1128 = vlaneseq
    %v1129 = vshrl.u32 %v1128, 7
    %v1130 = vsub.s32 0, %v1129
    %v1131 = vrot.slane %v1126, %v1130
    %v1132 = vlaneseq
    %v1133 = vshrl.u32 %v1132, 7
    %v1134 = vsub.s32 1, %v1133
    %v1135 = vrot.slane %v1126, %v1134
    %v1138 = vmul.f32 %v1123, %v1131
    %v1139 = vmul.f32 %v1124, %v1135
    %v1140 = vadd.f32 %v1116, %v1138
    %v1141 = vadd.f32 %v1117, %v1139
    %1142 = vrot.lane.b32.xlu0 %v1039, 96
    %v1143 = vpop.permute.xlu0 %1142
    %1144 = vrot.lane.b32.xlu0 %v1040, 96
    %v1145 = vpop.permute.xlu0 %1144
    %vm1146 = vcmp.lt.s32.totalorder %v149, 96
    %v1147 = vsel %vm1146, %v1143, %v1145
    %v1148 = vsel %vm1146, %v1145, %v1143
    %s1149 = scalar_lea.vmem [#allocation7], 5
    %v1150 = vld [vmem:[%s1149] ss:$8 sm:$0x3]
    %v1152 = vlaneseq
    %v1153 = vshrl.u32 %v1152, 7
    %v1154 = vsub.s32 0, %v1153
    %v1155 = vrot.slane %v1150, %v1154
    %v1156 = vlaneseq
    %v1157 = vshrl.u32 %v1156, 7
    %v1158 = vsub.s32 1, %v1157
    %v1159 = vrot.slane %v1150, %v1158
    %v1162 = vmul.f32 %v1147, %v1155
    %v1163 = vmul.f32 %v1148, %v1159
    %v1164 = vadd.f32 %v1140, %v1162
    %v1165 = vadd.f32 %v1141, %v1163
    %1166 = vrot.lane.b32.xlu0 %v1045, 80
    %v1167 = vpop.permute.xlu0 %1166
    %1168 = vrot.lane.b32.xlu0 %v1046, 80
    %v1169 = vpop.permute.xlu0 %1168
    %vm1170 = vcmp.lt.s32.totalorder %v149, 80
    %v1171 = vsel %vm1170, %v1167, %v1169
    %v1172 = vsel %vm1170, %v1169, %v1167
    %s1173 = scalar_lea.vmem [#allocation7], 6
    %v1174 = vld [vmem:[%s1173] ss:$8 sm:$0x3]
    %v1176 = vlaneseq
    %v1177 = vshrl.u32 %v1176, 7
    %v1178 = vsub.s32 0, %v1177
    %v1179 = vrot.slane %v1174, %v1178
    %v1180 = vlaneseq
    %v1181 = vshrl.u32 %v1180, 7
    %v1182 = vsub.s32 1, %v1181
    %v1183 = vrot.slane %v1174, %v1182
    %v1186 = vmul.f32 %v1171, %v1179
    %v1187 = vmul.f32 %v1172, %v1183
    %v1188 = vadd.f32 %v1164, %v1186
    %v1189 = vadd.f32 %v1165, %v1187
    %v1190 = vxor.u32 %v1188, 2147483648
    %v1191 = vxor.u32 %v1189, 2147483648
    %v1192 = vmul.f32 %v1190, 1.442695
    %v1193 = vpow.pop %v1192
    %v1194 = vmul.f32 %v1191, 1.442695
    %v1195 = vpow.pop %v1194
    %v1196 = vadd.f32 %v1193, 1.0
    %v1197 = vadd.f32 %v1195, 1.0
    %v1198 = vrcp.pop %v1196
    %v1199 = vmul.f32 1.0, %v1198
    %v1200 = vrcp.pop %v1197
    %v1201 = vmul.f32 1.0, %v1200
    %v1204 = vcombine.low %v1199, %v1201
    %v1206 = vunpack.c.l.s4 1966171168
    %v1207 = vunpack.c.0.s8 %v1206
    %v1208 = vlaneseq
    %v1209 = vshrl.u32 %v1208, 7
    %v1210 = vsub.s32 %v1207, %v1209
    %v1211 = vrot.slane %v1204, %v1210
    %v1212 = vcombine.high %v1211, %v1211
    %v1214 = vunpack.c.l.s4 1966171168
    %v1215 = vunpack.c.0.s8 %v1214
    %v1216 = vlaneseq
    %v1217 = vshrl.u32 %v1216, 7
    %v1218 = vsub.s32 %v1215, %v1217
    %v1219 = vrot.slane %v1211, %v1218
    %v1221 = vunpack.c.l.s4 1966171168
    %v1222 = vunpack.c.0.s8 %v1221
    %v1223 = vlaneseq
    %v1224 = vshrl.u32 %v1223, 7
    %v1225 = vsub.s32 %v1222, %v1224
    %v1226 = vrot.slane %v1212, %v1225
    %v1227 = vlaneseq
    %v1228 = vshrl.u32 %v1227, 7
    %v1229 = vsub.s32 0, %v1228
    %v1230 = vrot.slane %v1219, %v1229
    %v1231 = vlaneseq
    %v1232 = vshrl.u32 %v1231, 7
    %v1233 = vsub.s32 1, %v1232
    %v1234 = vrot.slane %v1219, %v1233
    %v1235 = vlaneseq
    %v1236 = vshrl.u32 %v1235, 7
    %v1237 = vsub.s32 0, %v1236
    %v1238 = vrot.slane %v1226, %v1237
    %v1239 = vlaneseq
    %v1240 = vshrl.u32 %v1239, 7
    %v1241 = vsub.s32 1, %v1240
    %v1242 = vrot.slane %v1226, %v1241
    %v1243 = vcombine.low %v1230, %v1234
    %v1244 = vcombine.low %v1238, %v1242
    %v1247 = vmul.f32 %v66, %v1243
    %v1248 = vmul.f32 %v67, %v1244
    %1249 = vst [vmem:[#allocation10] sm:$0xff] %v1247
    %1250 = vst [vmem:[#allocation10 + $0x8] sm:$0xff] %v1248
    // Predicated region
    $region34: #{tpu_custom_call.1} parent=1 // pred_check
      _
    $region35: #{tpu_custom_call.1} parent=1 // pred_check_branch
      %1252 = sbr.rel (0) target = $region37
    $region36: #{tpu_custom_call.1} parent=1 // pred_region
      %s1254 = ssub.s32 256, 256
      %1255 = vsyncadd [#allocation4], %s1254
      %s1256 = sshll.u32 [#allocation10], 4
      %s1257 = int_to_ptr.vmem [resolvable:$true] %s1256
      %1262 = dma.vmem_to_hbm [thread:$0]  %s1257, 256, %s4, [#allocation4], 128, 128, 8
    $region37: #{tpu_custom_call.1} parent=1 // pred_fallthru
      _
    // Predicated region
    $region38: #{tpu_custom_call.1} parent=1 // pred_check
      _
    $region39: #{tpu_custom_call.1} parent=1 // pred_check_branch
      %1264 = sbr.rel (0) target = $region41
    $region40: #{tpu_custom_call.1} parent=1 // pred_region
      %1265 = dma.done [#allocation4], 256
    $region41: #{tpu_custom_call.1} parent=1 // pred_fallthru
      _
    %1266 = vsyncpa [#allocation3], 1
    %1267 = vsyncpa [#allocation8], 1
    %1268 = vsyncpa [#allocation4], 1
    %1269 = vsyncpa [#allocation5], 1

</llo_original>
